<compile_context>
chip_gen: v6e
topology: v6e:2x2x1
jax: 0.10.0
libtpu: 0.0.40
codegen_flags: <defaults>
</compile_context>

<pallas_src>
import functools
import math

import jax
import jax.numpy as jnp
from jax import lax
from jax.experimental import pallas as pl
from jax.experimental.pallas import tpu as pltpu


def _softplus(x):
    return jnp.where(x > 20.0, x, jnp.log(1.0 + jnp.exp(x)))


def _silu(x):
    return x * jax.nn.sigmoid(x)


def _mamba_block_kernel(
    x_ref,        # (B_TILE, L, d_model)            compute dtype (bf16)
    w_in_ref,     # (d_model, 2*d_inner)            compute dtype, cols = [x | res]
    conv_w_ref,   # (d_conv, d_inner)               f32; tap k hits x[t-(d_conv-1)+k]
    conv_b_ref,   # (1, d_inner)                    f32
    w_x_ref,      # (d_inner, dt_rank + 2*d_state)  compute dtype, cols = [delta|B|C]
    w_dt_ref,     # (dt_rank, d_inner)              compute dtype
    b_dt_ref,     # (1, d_inner)                    f32
    a_neg_ref,    # (d_state, d_inner)              f32, A = -exp(A_log)
    d_ref,        # (1, d_inner)                    f32
    w_out_ref,    # (d_inner, d_model)              compute dtype
    out_ref,      # (B_TILE, L, d_model)            f32
    dt_s,         # scratch (M, d_inner) f32        softplus(dt_proj(...))
    du_s,         # scratch (M, d_inner) f32        delta * u
    b_s,          # scratch (M, d_state) f32
    c_s,          # scratch (M, d_state) f32
    y_s,          # scratch (M, d_inner) f32        scan output
    *,
    exp_dtype,
    d_inner_tile,
):
    b_tile, l, d_model = x_ref.shape
    d_conv = conv_w_ref.shape[0]
    dt_rank = w_dt_ref.shape[0]
    d_state, d_inner = a_neg_ref.shape
    m = b_tile * l
    cdt = w_in_ref.dtype
    chunk = math.gcd(l, 8)            # sublane-aligned scan chunk (8 when L % 8 == 0)
    n_chunks = l // chunk

    # ---- fused in_proj: one tall-M bf16 MXU matmul, slice into x / res branches ----
    xb = x_ref[...].reshape(m, d_model)
    xzres = jnp.dot(xb, w_in_ref[...], preferred_element_type=jnp.float32)
    xz = xzres[:, :d_inner]                                    # (m, d_inner) f32
    res = xzres[:, d_inner:]                                   # (m, d_inner) f32

    # ---- causal depthwise conv1d along L over the flattened rows ----
    # (m, 1) position-in-sequence mask: taps never leak across the batch
    # boundaries of the flattened tile; broadcasts over d_inner.
    row_in_seq = jnp.remainder(
        lax.broadcasted_iota(jnp.int32, (m, 1), 0), l)
    conv = xz * conv_w_ref[pl.ds(d_conv - 1, 1), :]            # shift-0 tap
    for k in range(d_conv - 1):                                # static unroll
        shift = d_conv - 1 - k
        wk = conv_w_ref[pl.ds(k, 1), :]                        # (1, d_inner)
        shifted = jnp.where(row_in_seq >= shift,
                            pltpu.roll(xz, shift, axis=0), 0.0)
        conv = conv + shifted * wk
    conv = conv + conv_b_ref[...]
    u = _silu(conv)                                            # (m, d_inner) f32

    # ---- fused x_proj (delta_r | B | C) + dt_proj (tall-M bf16 matmuls) ----
    x_dbl = jnp.dot(u.astype(cdt), w_x_ref[...],
                    preferred_element_type=jnp.float32)        # (m, r + 2n)
    delta_r = x_dbl[:, :dt_rank]
    bmat = x_dbl[:, dt_rank:dt_rank + d_state]
    cmat = x_dbl[:, dt_rank + d_state:]
    delta = _softplus(
        jnp.dot(delta_r.astype(cdt), w_dt_ref[...],
                preferred_element_type=jnp.float32) + b_dt_ref[...])   # (m, d_inner)

    # ---- stage scan inputs in VMEM so chunk reads are 8-row tile loads ----
    dt_s[...] = delta
    du_s[...] = delta * u
    b_s[...] = bmat
    c_s[...] = cmat

    # ---- selective scan:  h_t = exp(dt_t*A)*h_{t-1} + dt_t*B_t*u_t ; y_t = C_t.h_t ----
    # Single fori_loop over (batch, chunk); h is reset at each sequence start.
    # Everything that does not depend on the carry (exp decays, B (x) dt*u outer
    # products, C.h readouts) is hoisted out of the serial 8-step recurrence, so
    # the carry path is 2 VPU ops/step.  Tiled over d_inner to bound vreg live set.
    for di0 in range(0, d_inner, d_inner_tile):                # static tile loop
        dit = min(d_inner_tile, d_inner - di0)
        a_t = a_neg_ref[:, pl.ds(di0, dit)].astype(exp_dtype)  # (d_state, dit)

        def scan_chunk(i, h, di0=di0, dit=dit, a_t=a_t):
            # i enumerates (batch, chunk) row-major; chunk index = i % n_chunks.
            h = jnp.where((i % n_chunks) == 0, jnp.zeros_like(h), h)
            start = pl.multiple_of(i * chunk, chunk)
            dt_c = dt_s[pl.ds(start, chunk), pl.ds(di0, dit)]   # (chunk, dit)
            du_c = du_s[pl.ds(start, chunk), pl.ds(di0, dit)]   # (chunk, dit)
            b_c = b_s[pl.ds(start, chunk), :]                   # (chunk, d_state)
            c_c = c_s[pl.ds(start, chunk), :]                   # (chunk, d_state)

            # carry-independent work, computed ahead of the serial recurrence
            da = [jnp.exp(a_t * dt_c[t:t + 1, :].astype(exp_dtype))
                  for t in range(chunk)]                         # (d_state, dit)
            dbu = [lax.dot_general(b_c[t:t + 1, :], du_c[t:t + 1, :],
                                   (((0,), (0,)), ((), ())),
                                   preferred_element_type=jnp.float32)
                   for t in range(chunk)]                        # (d_state, dit)

            hs = []
            for t in range(chunk):                               # serial carry path
                h = da[t] * h + dbu[t]                           # 2 VPU ops / step
                hs.append(h)

            ys = [jnp.dot(c_c[t:t + 1, :], hs[t],
                          preferred_element_type=jnp.float32)
                  for t in range(chunk)]                         # (1, dit) each
            y_s[pl.ds(start, chunk), pl.ds(di0, dit)] = jnp.concatenate(ys, axis=0)
            return h

        lax.fori_loop(0, b_tile * n_chunks, scan_chunk,
                      jnp.zeros((d_state, dit), jnp.float32))

    # ---- skip connection, gating, fused out_proj ----
    y = y_s[...] + u * d_ref[...]
    y = y * _silu(res)
    out = jnp.dot(y.astype(cdt), w_out_ref[...], preferred_element_type=jnp.float32)
    out_ref[...] = out.reshape(b_tile, l, d_model)


def _tpu_generation_config():
    """Returns (vmem_limit_bytes, target_rows, need_multi_step, exp_dtype)."""
    vmem_cap = None
    kind = ""
    try:
        vmem_cap = getattr(pltpu.get_tpu_info(), "vmem_capacity_bytes", None)
    except Exception:
        pass
    try:
        kind = jax.devices()[0].device_kind.lower()
    except Exception:
        pass
    # bf16 exp only where the EUP/VPU are bf16-native (v6e / v7x); fp32 on v5e-.
    old_gen = any(t in kind for t in ("v2", "v3", "v4", "v5"))
    exp_dtype = jnp.float32 if old_gen else jnp.bfloat16
    if vmem_cap is None:
        vmem_cap = 128 * 1024 * 1024 if old_gen else 64 * 1024 * 1024
    if vmem_cap <= 80 * 1024 * 1024:
        # v7x-like: 64 MiB VMEM / 2 TensorCores -> smaller tiles, and keep the
        # grid >= 2 steps so the "parallel" batch axis shards across both cores.
        limit = min(vmem_cap - 12 * 1024 * 1024, 52 * 1024 * 1024)
        return limit, 512, True, exp_dtype
    # v5e / v6e: 128 MiB VMEM, 1 TensorCore -> big tiles, ~100 MiB scoped limit.
    return 100 * 1024 * 1024, 1024, False, exp_dtype


def _pick_b_tile(b, l, target_rows, need_multi_step):
    """Largest divisor of b with b_tile*l <= target_rows (and >=2 grid steps if asked)."""
    best = 1
    for cand in range(1, b + 1):
        if b % cand:
            continue
        if need_multi_step and b > 1 and (b // cand) < 2:
            continue
        if cand * l <= max(target_rows, l):
            best = cand
    return best


def prepare_mamba_params(params, compute_dtype=jnp.bfloat16):
    """Fuse / pre-cast the MambaBlock weights once, outside the kernel.

    params: (w_in_x, w_in_res, conv_w, conv_b, w_delta, w_b, w_c,
             w_dt, b_dt, a_logT, d_vec, w_out) with (in, out)-transposed matrices.
    """
    (w_in_x, w_in_res, conv_w, conv_b, w_delta, w_b, w_c,
     w_dt, b_dt, a_logT, d_vec, w_out) = params
    w_in_f = jnp.concatenate([w_in_x, w_in_res], axis=1).astype(compute_dtype)
    w_x_f = jnp.concatenate([w_delta, w_b, w_c], axis=1).astype(compute_dtype)
    a_neg = -jnp.exp(a_logT.astype(jnp.float32))          # A = -exp(A_log), once
    return (w_in_f,
            conv_w.astype(jnp.float32), conv_b.astype(jnp.float32),
            w_x_f, w_dt.astype(compute_dtype), b_dt.astype(jnp.float32),
            a_neg, d_vec.astype(jnp.float32), w_out.astype(compute_dtype))


def mamba_block_pallas(x, prepared_params, b_tile=None, d_inner_tile=512):
    (w_in_f, conv_w, conv_b, w_x_f, w_dt, b_dt, a_neg, d_vec, w_out) = prepared_params
    b, l, d_model = x.shape
    d_state, d_inner = a_neg.shape
    compute_dtype = w_in_f.dtype

    vmem_limit, target_rows, need_multi, exp_dtype = _tpu_generation_config()

    # Bound the batch tile by both the row target and a budget for the fp32 scan
    # scratch plus (double-buffered) activation blocks.
    bytes_per_row = 4 * (3 * d_inner + 2 * d_state + 4 * d_model)
    rows_by_vmem = max(l, int(0.5 * vmem_limit) // bytes_per_row)
    if b_tile is None:
        b_tile = _pick_b_tile(b, l, min(target_rows, rows_by_vmem), need_multi)
    assert b % b_tile == 0
    m = b_tile * l
    d_inner_tile = min(d_inner_tile, d_inner)

    weights = [w_in_f, conv_w, conv_b, w_x_f, w_dt, b_dt, a_neg, d_vec, w_out]
    in_specs = [pl.BlockSpec((b_tile, l, d_model), lambda i: (i, 0, 0))]
    for w in weights:
        # Constant index_map: block stays resident across all grid steps.
        in_specs.append(
            pl.BlockSpec(tuple(w.shape), lambda i, nd=w.ndim: (0,) * nd))

    kernel = functools.partial(_mamba_block_kernel,
                               exp_dtype=exp_dtype,
                               d_inner_tile=d_inner_tile)

    return pl.pallas_call(
        kernel,
        grid=(b // b_tile,),
        in_specs=in_specs,
        out_specs=pl.BlockSpec((b_tile, l, d_model), lambda i: (i, 0, 0)),
        out_shape=jax.ShapeDtypeStruct((b, l, d_model), jnp.float32),
        scratch_shapes=[
            pltpu.VMEM((m, d_inner), jnp.float32),   # delta
            pltpu.VMEM((m, d_inner), jnp.float32),   # delta * u
            pltpu.VMEM((m, d_state), jnp.float32),   # B
            pltpu.VMEM((m, d_state), jnp.float32),   # C
            pltpu.VMEM((m, d_inner), jnp.float32),   # y (scan output)
        ],
        compiler_params=pltpu.CompilerParams(
            dimension_semantics=("parallel",),
            vmem_limit_bytes=int(vmem_limit)),
    )(x.astype(compute_dtype), *weights)


def mamba_block_ref(x, params):
    """Pure-JAX fp32 reference implementing identical semantics."""
    (w_in_x, w_in_res, conv_w, conv_b, w_delta, w_b, w_c,
     w_dt, b_dt, a_logT, d_vec, w_out) = params
    b, l, _ = x.shape
    d_conv = conv_w.shape[0]

    xz = x @ w_in_x
    res = x @ w_in_res
    pad = d_conv - 1
    xz_p = jnp.pad(xz, ((0, 0), (pad, 0), (0, 0)))
    conv = jnp.zeros_like(xz)
    for k in range(d_conv):
        conv = conv + xz_p[:, k:k + l, :] * conv_w[k][None, None, :]
    conv = conv + conv_b[None]
    u = conv * jax.nn.sigmoid(conv)

    delta_r = u @ w_delta
    B = u @ w_b
    C = u @ w_c
    delta = _softplus(delta_r @ w_dt + b_dt)
    A = -jnp.exp(a_logT)                                        # (n, d_inner)
    dA = jnp.exp(delta[:, :, None, :] * A[None, None, :, :])    # (b,l,n,d_in)
    dBu = B[:, :, :, None] * (delta * u)[:, :, None, :]         # (b,l,n,d_in)

    def step(h, inp):
        dA_t, dBu_t, C_t = inp
        h = dA_t * h + dBu_t
        return h, jnp.einsum('bnd,bn->bd', h, C_t)

    h0 = jnp.zeros((b, A.shape[0], u.shape[-1]), jnp.float32)
    _, ys = lax.scan(step, h0, (dA.transpose(1, 0, 2, 3),
                                dBu.transpose(1, 0, 2, 3),
                                C.transpose(1, 0, 2)))
    y = ys.transpose(1, 0, 2)
    y = y + u * d_vec
    y = y * (res * jax.nn.sigmoid(res))
    return y @ w_out


if __name__ == "__main__":
    # ModelArgs(d_model=32): d_inner=64, dt_rank=ceil(32/16)=2, d_state=16, d_conv=4
    B, L, D_MODEL = 2, 8, 32
    EXPAND, D_STATE, D_CONV = 2, 16, 4
    D_INNER = EXPAND * D_MODEL
    DT_RANK = math.ceil(D_MODEL / 16)
    DT_MIN, DT_MAX, DT_INIT_FLOOR = 1e-3, 1e-1, 1e-4

    key = jax.random.PRNGKey(0)
    ks = jax.random.split(key, 12)

    def unif(k, shape, bound):
        return jax.random.uniform(k, shape, jnp.float32, -bound, bound)

    s_in = 1.0 / math.sqrt(D_MODEL)
    s_x = 1.0 / math.sqrt(D_INNER)
    s_conv = 1.0 / math.sqrt(D_CONV)
    dt_init_std = DT_RANK ** -0.5

    w_in_x = unif(ks[0], (D_MODEL, D_INNER), s_in)
    w_in_res = unif(ks[1], (D_MODEL, D_INNER), s_in)
    conv_w = unif(ks[2], (D_CONV, D_INNER), s_conv)
    conv_b = unif(ks[3], (1, D_INNER), s_conv)
    w_delta = unif(ks[4], (D_INNER, DT_RANK), s_x)
    w_b = unif(ks[5], (D_INNER, D_STATE), s_x)
    w_c = unif(ks[6], (D_INNER, D_STATE), s_x)
    w_dt = unif(ks[7], (DT_RANK, D_INNER), dt_init_std)
    # dt_proj bias: inv_dt initialization (as in the module __init__)
    dt = jnp.exp(jax.random.uniform(ks[8], (D_INNER,), jnp.float32)
                 * (math.log(DT_MAX) - math.log(DT_MIN)) + math.log(DT_MIN))
    dt = jnp.maximum(dt, DT_INIT_FLOOR)
    b_dt = (dt + jnp.log(-jnp.expm1(-dt)))[None, :]
    a_logT = jnp.broadcast_to(
        jnp.log(jnp.arange(1, D_STATE + 1, dtype=jnp.float32))[:, None],
        (D_STATE, D_INNER)).astype(jnp.float32)
    d_vec = jnp.ones((1, D_INNER), jnp.float32)
    w_out = unif(ks[9], (D_INNER, D_MODEL), s_x)

    params = (w_in_x, w_in_res, conv_w, conv_b, w_delta, w_b, w_c,
              w_dt, b_dt, a_logT, d_vec, w_out)

    x = jax.random.normal(ks[10], (B, L, D_MODEL), jnp.float32)

    prepared = prepare_mamba_params(params)                    # bf16 fused weights
    out = jax.block_until_ready(jax.jit(mamba_block_pallas)(x, prepared))
    ref = jax.block_until_ready(mamba_block_ref(x, params))

    err = float(jnp.max(jnp.abs(out - ref)))
    if out.shape != (B, L, D_MODEL) or not bool(jnp.all(jnp.isfinite(out))) or err > 5e-2:
        raise SystemExit(f"mismatch: max_abs_err={err}")
    print("KERNEL_OK")
</pallas_src>

<mosaic_0001>
module attributes {stable_mosaic.version = 11 : i64} {
  func.func @_mamba_block_kernel(%arg0: i32, %arg1: memref<1x8x32xbf16, #tpu.memory_space<vmem>>, %arg2: memref<32x128xbf16, #tpu.memory_space<vmem>>, %arg3: memref<4x64xf32, #tpu.memory_space<vmem>>, %arg4: memref<1x64xf32, #tpu.memory_space<vmem>>, %arg5: memref<64x34xbf16, #tpu.memory_space<vmem>>, %arg6: memref<2x64xbf16, #tpu.memory_space<vmem>>, %arg7: memref<1x64xf32, #tpu.memory_space<vmem>>, %arg8: memref<16x64xf32, #tpu.memory_space<vmem>>, %arg9: memref<1x64xf32, #tpu.memory_space<vmem>>, %arg10: memref<64x32xbf16, #tpu.memory_space<vmem>>, %arg11: memref<1x8x32xf32, #tpu.memory_space<vmem>>, %arg12: memref<8x64xf32, #tpu.memory_space<vmem>>, %arg13: memref<8x64xf32, #tpu.memory_space<vmem>>, %arg14: memref<8x16xf32, #tpu.memory_space<vmem>>, %arg15: memref<8x16xf32, #tpu.memory_space<vmem>>, %arg16: memref<8x64xf32, #tpu.memory_space<vmem>>) attributes {dimension_semantics = [#tpu.dimension_semantics<parallel>], iteration_bounds = array<i64: 2>, scalar_prefetch = 0 : i64, scratch_operands = 5 : i64, tpu.core_type = #tpu.core_type<tc>, window_params = [{transform_indices = @transform_0, window_bounds = array<i64: 1, 8, 32>}, {pipeline_mode = #tpu.pipeline_mode<synchronous>, transform_indices = @transform_1, window_bounds = array<i64: 32, 128>}, {pipeline_mode = #tpu.pipeline_mode<synchronous>, transform_indices = @transform_2, window_bounds = array<i64: 4, 64>}, {pipeline_mode = #tpu.pipeline_mode<synchronous>, transform_indices = @transform_3, window_bounds = array<i64: 1, 64>}, {pipeline_mode = #tpu.pipeline_mode<synchronous>, transform_indices = @transform_4, window_bounds = array<i64: 64, 34>}, {pipeline_mode = #tpu.pipeline_mode<synchronous>, transform_indices = @transform_5, window_bounds = array<i64: 2, 64>}, {pipeline_mode = #tpu.pipeline_mode<synchronous>, transform_indices = @transform_6, window_bounds = array<i64: 1, 64>}, {pipeline_mode = #tpu.pipeline_mode<synchronous>, transform_indices = @transform_7, window_bounds = array<i64: 16, 64>}, {pipeline_mode = #tpu.pipeline_mode<synchronous>, transform_indices = @transform_8, window_bounds = array<i64: 1, 64>}, {pipeline_mode = #tpu.pipeline_mode<synchronous>, transform_indices = @transform_9, window_bounds = array<i64: 64, 32>}, {transform_indices = @transform_10, window_bounds = array<i64: 1, 8, 32>}]} {
    %c0 = arith.constant 0 : index
    %c0_0 = arith.constant 0 : index
    %c0_1 = arith.constant 0 : index
    %0 = vector.load %arg1[%c0, %c0_0, %c0_1] : memref<1x8x32xbf16, #tpu.memory_space<vmem>>, vector<1x8x32xbf16>
    %1 = vector.shape_cast %0 : vector<1x8x32xbf16> to vector<8x32xbf16>
    %c0_2 = arith.constant 0 : index
    %c0_3 = arith.constant 0 : index
    %2 = vector.load %arg2[%c0_2, %c0_3] : memref<32x128xbf16, #tpu.memory_space<vmem>>, vector<32x128xbf16>
    %cst = arith.constant dense<0.000000e+00> : vector<8x128xf32>
    %3 = tpu.matmul %1, %2, %cst {dimension_numbers = #tpu.dot_dimension_numbers<[1], [0], [0], [1], [0, 0, 1, 1], [], []>} : vector<8x32xbf16>, vector<32x128xbf16>, vector<8x128xf32> -> vector<8x128xf32>
    %4 = vector.extract_strided_slice %3 {offsets = [0, 0], sizes = [8, 64], strides = [1, 1]} : vector<8x128xf32> to vector<8x64xf32>
    %5 = vector.extract_strided_slice %3 {offsets = [0, 64], sizes = [8, 64], strides = [1, 1]} : vector<8x128xf32> to vector<8x64xf32>
    %6 = tpu.iota {dimensions = array<i32: 0>} : vector<8x1xi32>
    %c8_i32 = arith.constant 8 : i32
    %c0_i32 = arith.constant 0 : i32
    %7 = arith.cmpi eq, %c8_i32, %c0_i32 : i32
    %c1_i32 = arith.constant 1 : i32
    %8 = arith.select %7, %c1_i32, %c8_i32 : i32
    %9 = vector.broadcast %8 : i32 to vector<8x1xi32>
    %10 = arith.remsi %6, %9 : vector<8x1xi32>
    %c0_i32_4 = arith.constant 0 : i32
    %11 = vector.broadcast %c0_i32_4 : i32 to vector<8x1xi32>
    %12 = arith.cmpi ne, %10, %11 : vector<8x1xi32>
    %c0_i32_5 = arith.constant 0 : i32
    %13 = vector.broadcast %c0_i32_5 : i32 to vector<8x1xi32>
    %14 = arith.cmpi slt, %10, %13 : vector<8x1xi32>
    %c0_i32_6 = arith.constant 0 : i32
    %15 = arith.cmpi slt, %8, %c0_i32_6 : i32
    %16 = vector.broadcast %15 : i1 to vector<8x1xi1>
    %17 = vector.broadcast %16 : vector<8x1xi1> to vector<8x1xi1>
    %18 = arith.xori %14, %17 : vector<8x1xi1>
    %19 = arith.andi %18, %12 : vector<8x1xi1>
    %20 = vector.broadcast %8 : i32 to vector<8x1xi32>
    %21 = arith.addi %10, %20 : vector<8x1xi32>
    %22 = arith.select %19, %21, %10 : vector<8x1xi1>, vector<8x1xi32>
    %c3 = arith.constant 3 : index
    %c0_7 = arith.constant 0 : index
    %23 = vector.load %arg3[%c3, %c0_7] : memref<4x64xf32, #tpu.memory_space<vmem>>, vector<1x64xf32>
    %24 = vector.broadcast %23 : vector<1x64xf32> to vector<8x64xf32>
    %25 = arith.mulf %4, %24 : vector<8x64xf32>
    %c0_8 = arith.constant 0 : index
    %c0_9 = arith.constant 0 : index
    %26 = vector.load %arg3[%c0_8, %c0_9] : memref<4x64xf32, #tpu.memory_space<vmem>>, vector<1x64xf32>
    %c3_i32 = arith.constant 3 : i32
    %27 = vector.broadcast %c3_i32 : i32 to vector<8x1xi32>
    %28 = arith.cmpi sge, %22, %27 : vector<8x1xi32>
    %c3_i32_10 = arith.constant 3 : i32
    %29 = tpu.dynamic_rotate %4 by %c3_i32_10 dim 0 : vector<8x64xf32>, i32 -> vector<8x64xf32>
    %cst_11 = arith.constant 0.000000e+00 : f32
    %30 = vector.shape_cast %28 : vector<8x1xi1> to vector<8x1xi1>
    %31 = vector.broadcast %30 : vector<8x1xi1> to vector<8x64xi1>
    %32 = vector.broadcast %cst_11 : f32 to vector<8x64xf32>
    %33 = arith.select %31, %29, %32 : vector<8x64xi1>, vector<8x64xf32>
    %34 = vector.broadcast %26 : vector<1x64xf32> to vector<8x64xf32>
    %35 = arith.mulf %33, %34 : vector<8x64xf32>
    %36 = arith.addf %25, %35 : vector<8x64xf32>
    %c1 = arith.constant 1 : index
    %c0_12 = arith.constant 0 : index
    %37 = vector.load %arg3[%c1, %c0_12] : memref<4x64xf32, #tpu.memory_space<vmem>>, vector<1x64xf32>
    %c2_i32 = arith.constant 2 : i32
    %38 = vector.broadcast %c2_i32 : i32 to vector<8x1xi32>
    %39 = arith.cmpi sge, %22, %38 : vector<8x1xi32>
    %c2_i32_13 = arith.constant 2 : i32
    %40 = tpu.dynamic_rotate %4 by %c2_i32_13 dim 0 : vector<8x64xf32>, i32 -> vector<8x64xf32>
    %cst_14 = arith.constant 0.000000e+00 : f32
    %41 = vector.shape_cast %39 : vector<8x1xi1> to vector<8x1xi1>
    %42 = vector.broadcast %41 : vector<8x1xi1> to vector<8x64xi1>
    %43 = vector.broadcast %cst_14 : f32 to vector<8x64xf32>
    %44 = arith.select %42, %40, %43 : vector<8x64xi1>, vector<8x64xf32>
    %45 = vector.broadcast %37 : vector<1x64xf32> to vector<8x64xf32>
    %46 = arith.mulf %44, %45 : vector<8x64xf32>
    %47 = arith.addf %36, %46 : vector<8x64xf32>
    %c2 = arith.constant 2 : index
    %c0_15 = arith.constant 0 : index
    %48 = vector.load %arg3[%c2, %c0_15] : memref<4x64xf32, #tpu.memory_space<vmem>>, vector<1x64xf32>
    %c1_i32_16 = arith.constant 1 : i32
    %49 = vector.broadcast %c1_i32_16 : i32 to vector<8x1xi32>
    %50 = arith.cmpi sge, %22, %49 : vector<8x1xi32>
    %c1_i32_17 = arith.constant 1 : i32
    %51 = tpu.dynamic_rotate %4 by %c1_i32_17 dim 0 : vector<8x64xf32>, i32 -> vector<8x64xf32>
    %cst_18 = arith.constant 0.000000e+00 : f32
    %52 = vector.shape_cast %50 : vector<8x1xi1> to vector<8x1xi1>
    %53 = vector.broadcast %52 : vector<8x1xi1> to vector<8x64xi1>
    %54 = vector.broadcast %cst_18 : f32 to vector<8x64xf32>
    %55 = arith.select %53, %51, %54 : vector<8x64xi1>, vector<8x64xf32>
    %56 = vector.broadcast %48 : vector<1x64xf32> to vector<8x64xf32>
    %57 = arith.mulf %55, %56 : vector<8x64xf32>
    %58 = arith.addf %47, %57 : vector<8x64xf32>
    %c0_19 = arith.constant 0 : index
    %c0_20 = arith.constant 0 : index
    %59 = vector.load %arg4[%c0_19, %c0_20] : memref<1x64xf32, #tpu.memory_space<vmem>>, vector<1x64xf32>
    %60 = vector.broadcast %59 : vector<1x64xf32> to vector<8x64xf32>
    %61 = arith.addf %58, %60 : vector<8x64xf32>
    %62 = arith.negf %61 : vector<8x64xf32>
    %63 = math.exp %62 : vector<8x64xf32>
    %cst_21 = arith.constant 1.000000e+00 : f32
    %64 = vector.broadcast %cst_21 : f32 to vector<8x64xf32>
    %65 = arith.addf %64, %63 : vector<8x64xf32>
    %66 = arith.divf %64, %65 : vector<8x64xf32>
    %67 = arith.mulf %61, %66 : vector<8x64xf32>
    %68 = arith.truncf %67 : vector<8x64xf32> to vector<8x64xbf16>
    %c0_22 = arith.constant 0 : index
    %c0_23 = arith.constant 0 : index
    %69 = vector.load %arg5[%c0_22, %c0_23] : memref<64x34xbf16, #tpu.memory_space<vmem>>, vector<64x34xbf16>
    %cst_24 = arith.constant dense<0.000000e+00> : vector<8x34xf32>
    %70 = tpu.matmul %68, %69, %cst_24 {dimension_numbers = #tpu.dot_dimension_numbers<[1], [0], [0], [1], [0, 0, 1, 1], [], []>} : vector<8x64xbf16>, vector<64x34xbf16>, vector<8x34xf32> -> vector<8x34xf32>
    %71 = vector.extract_strided_slice %70 {offsets = [0, 0], sizes = [8, 2], strides = [1, 1]} : vector<8x34xf32> to vector<8x2xf32>
    %72 = vector.extract_strided_slice %70 {offsets = [0, 2], sizes = [8, 16], strides = [1, 1]} : vector<8x34xf32> to vector<8x16xf32>
    %73 = vector.extract_strided_slice %70 {offsets = [0, 18], sizes = [8, 16], strides = [1, 1]} : vector<8x34xf32> to vector<8x16xf32>
    %74 = arith.truncf %71 : vector<8x2xf32> to vector<8x2xbf16>
    %c0_25 = arith.constant 0 : index
    %c0_26 = arith.constant 0 : index
    %75 = vector.load %arg6[%c0_25, %c0_26] : memref<2x64xbf16, #tpu.memory_space<vmem>>, vector<2x64xbf16>
    %cst_27 = arith.constant dense<0.000000e+00> : vector<8x64xf32>
    %76 = tpu.matmul %74, %75, %cst_27 {dimension_numbers = #tpu.dot_dimension_numbers<[1], [0], [0], [1], [0, 0, 1, 1], [], []>} : vector<8x2xbf16>, vector<2x64xbf16>, vector<8x64xf32> -> vector<8x64xf32>
    %c0_28 = arith.constant 0 : index
    %c0_29 = arith.constant 0 : index
    %77 = vector.load %arg7[%c0_28, %c0_29] : memref<1x64xf32, #tpu.memory_space<vmem>>, vector<1x64xf32>
    %78 = vector.broadcast %77 : vector<1x64xf32> to vector<8x64xf32>
    %79 = arith.addf %76, %78 : vector<8x64xf32>
    %cst_30 = arith.constant 2.000000e+01 : f32
    %80 = vector.broadcast %cst_30 : f32 to vector<8x64xf32>
    %81 = arith.cmpf ogt, %79, %80 : vector<8x64xf32>
    %82 = math.exp %79 : vector<8x64xf32>
    %cst_31 = arith.constant 1.000000e+00 : f32
    %83 = vector.broadcast %cst_31 : f32 to vector<8x64xf32>
    %84 = arith.addf %83, %82 : vector<8x64xf32>
    %85 = math.log %84 : vector<8x64xf32>
    %86 = arith.select %81, %79, %85 : vector<8x64xi1>, vector<8x64xf32>
    %c0_32 = arith.constant 0 : index
    %c0_33 = arith.constant 0 : index
    %87 = vector.load %arg12[%c0_32, %c0_33] : memref<8x64xf32, #tpu.memory_space<vmem>>, vector<8x64xf32>
    tpu.vector_store %arg12[%c0_32, %c0_33], %86 {strides = array<i32>} : memref<8x64xf32, #tpu.memory_space<vmem>>, vector<8x64xf32>,
    %88 = arith.mulf %86, %67 : vector<8x64xf32>
    %c0_34 = arith.constant 0 : index
    %c0_35 = arith.constant 0 : index
    %89 = vector.load %arg13[%c0_34, %c0_35] : memref<8x64xf32, #tpu.memory_space<vmem>>, vector<8x64xf32>
    tpu.vector_store %arg13[%c0_34, %c0_35], %88 {strides = array<i32>} : memref<8x64xf32, #tpu.memory_space<vmem>>, vector<8x64xf32>,
    %c0_36 = arith.constant 0 : index
    %c0_37 = arith.constant 0 : index
    %90 = vector.load %arg14[%c0_36, %c0_37] : memref<8x16xf32, #tpu.memory_space<vmem>>, vector<8x16xf32>
    tpu.vector_store %arg14[%c0_36, %c0_37], %72 {strides = array<i32>} : memref<8x16xf32, #tpu.memory_space<vmem>>, vector<8x16xf32>,
    %c0_38 = arith.constant 0 : index
    %c0_39 = arith.constant 0 : index
    %91 = vector.load %arg15[%c0_38, %c0_39] : memref<8x16xf32, #tpu.memory_space<vmem>>, vector<8x16xf32>
    tpu.vector_store %arg15[%c0_38, %c0_39], %73 {strides = array<i32>} : memref<8x16xf32, #tpu.memory_space<vmem>>, vector<8x16xf32>,
    %c0_40 = arith.constant 0 : index
    %c0_41 = arith.constant 0 : index
    %92 = vector.load %arg8[%c0_40, %c0_41] : memref<16x64xf32, #tpu.memory_space<vmem>>, vector<16x64xf32>
    %93 = arith.truncf %92 : vector<16x64xf32> to vector<16x64xbf16>
    %cst_42 = arith.constant 0.000000e+00 : f32
    %94 = vector.broadcast %cst_42 : f32 to vector<16x64xf32>
    %c0_i32_43 = arith.constant 0 : i32
    %c1_i32_44 = arith.constant 1 : i32
    %c0_i32_45 = arith.constant 0 : i32
    %95 = arith.cmpi eq, %c1_i32_44, %c0_i32_45 : i32
    %c1_i32_46 = arith.constant 1 : i32
    %96 = arith.select %95, %c1_i32_46, %c1_i32_44 : i32
    %97 = arith.remsi %c0_i32_43, %96 : i32
    %c0_i32_47 = arith.constant 0 : i32
    %98 = arith.cmpi ne, %97, %c0_i32_47 : i32
    %c0_i32_48 = arith.constant 0 : i32
    %99 = arith.cmpi slt, %97, %c0_i32_48 : i32
    %c0_i32_49 = arith.constant 0 : i32
    %100 = arith.cmpi slt, %96, %c0_i32_49 : i32
    %101 = arith.xori %99, %100 : i1
    %102 = arith.andi %101, %98 : i1
    %103 = arith.addi %97, %96 : i32
    %104 = arith.select %102, %103, %97 : i32
    %c0_i32_50 = arith.constant 0 : i32
    %105 = arith.cmpi eq, %104, %c0_i32_50 : i32
    %cst_51 = arith.constant 0.000000e+00 : f32
    %106 = vector.broadcast %cst_51 : f32 to vector<16x64xf32>
    %107 = arith.select %105, %106, %94 : vector<16x64xf32>
    %c8_i32_52 = arith.constant 8 : i32
    %108 = arith.muli %c0_i32_43, %c8_i32_52 : i32
    %109 = tpu.assume_multiple %108, 8 : i32
    %110 = arith.index_cast %109 : i32 to index
    %c0_53 = arith.constant 0 : index
    %111 = vector.load %arg12[%110, %c0_53] : memref<8x64xf32, #tpu.memory_space<vmem>>, vector<8x64xf32>
    %112 = arith.index_cast %109 : i32 to index
    %c0_54 = arith.constant 0 : index
    %113 = vector.load %arg13[%112, %c0_54] : memref<8x64xf32, #tpu.memory_space<vmem>>, vector<8x64xf32>
    %114 = arith.index_cast %109 : i32 to index
    %c0_55 = arith.constant 0 : index
    %115 = vector.load %arg14[%114, %c0_55] : memref<8x16xf32, #tpu.memory_space<vmem>>, vector<8x16xf32>
    %116 = arith.index_cast %109 : i32 to index
    %c0_56 = arith.constant 0 : index
    %117 = vector.load %arg15[%116, %c0_56] : memref<8x16xf32, #tpu.memory_space<vmem>>, vector<8x16xf32>
    %118 = vector.extract_strided_slice %111 {offsets = [0, 0], sizes = [1, 64], strides = [1, 1]} : vector<8x64xf32> to vector<1x64xf32>
    %119 = arith.truncf %118 : vector<1x64xf32> to vector<1x64xbf16>
    %120 = vector.broadcast %119 : vector<1x64xbf16> to vector<16x64xbf16>
    %121 = arith.mulf %93, %120 : vector<16x64xbf16>
    %122 = math.exp %121 : vector<16x64xbf16>
    %123 = vector.extract_strided_slice %111 {offsets = [1, 0], sizes = [1, 64], strides = [1, 1]} : vector<8x64xf32> to vector<1x64xf32>
    %124 = arith.truncf %123 : vector<1x64xf32> to vector<1x64xbf16>
    %125 = vector.broadcast %124 : vector<1x64xbf16> to vector<16x64xbf16>
    %126 = arith.mulf %93, %125 : vector<16x64xbf16>
    %127 = math.exp %126 : vector<16x64xbf16>
    %128 = vector.extract_strided_slice %111 {offsets = [2, 0], sizes = [1, 64], strides = [1, 1]} : vector<8x64xf32> to vector<1x64xf32>
    %129 = arith.truncf %128 : vector<1x64xf32> to vector<1x64xbf16>
    %130 = vector.broadcast %129 : vector<1x64xbf16> to vector<16x64xbf16>
    %131 = arith.mulf %93, %130 : vector<16x64xbf16>
    %132 = math.exp %131 : vector<16x64xbf16>
    %133 = vector.extract_strided_slice %111 {offsets = [3, 0], sizes = [1, 64], strides = [1, 1]} : vector<8x64xf32> to vector<1x64xf32>
    %134 = arith.truncf %133 : vector<1x64xf32> to vector<1x64xbf16>
    %135 = vector.broadcast %134 : vector<1x64xbf16> to vector<16x64xbf16>
    %136 = arith.mulf %93, %135 : vector<16x64xbf16>
    %137 = math.exp %136 : vector<16x64xbf16>
    %138 = vector.extract_strided_slice %111 {offsets = [4, 0], sizes = [1, 64], strides = [1, 1]} : vector<8x64xf32> to vector<1x64xf32>
    %139 = arith.truncf %138 : vector<1x64xf32> to vector<1x64xbf16>
    %140 = vector.broadcast %139 : vector<1x64xbf16> to vector<16x64xbf16>
    %141 = arith.mulf %93, %140 : vector<16x64xbf16>
    %142 = math.exp %141 : vector<16x64xbf16>
    %143 = vector.extract_strided_slice %111 {offsets = [5, 0], sizes = [1, 64], strides = [1, 1]} : vector<8x64xf32> to vector<1x64xf32>
    %144 = arith.truncf %143 : vector<1x64xf32> to vector<1x64xbf16>
    %145 = vector.broadcast %144 : vector<1x64xbf16> to vector<16x64xbf16>
    %146 = arith.mulf %93, %145 : vector<16x64xbf16>
    %147 = math.exp %146 : vector<16x64xbf16>
    %148 = vector.extract_strided_slice %111 {offsets = [6, 0], sizes = [1, 64], strides = [1, 1]} : vector<8x64xf32> to vector<1x64xf32>
    %149 = arith.truncf %148 : vector<1x64xf32> to vector<1x64xbf16>
    %150 = vector.broadcast %149 : vector<1x64xbf16> to vector<16x64xbf16>
    %151 = arith.mulf %93, %150 : vector<16x64xbf16>
    %152 = math.exp %151 : vector<16x64xbf16>
    %153 = vector.extract_strided_slice %111 {offsets = [7, 0], sizes = [1, 64], strides = [1, 1]} : vector<8x64xf32> to vector<1x64xf32>
    %154 = arith.truncf %153 : vector<1x64xf32> to vector<1x64xbf16>
    %155 = vector.broadcast %154 : vector<1x64xbf16> to vector<16x64xbf16>
    %156 = arith.mulf %93, %155 : vector<16x64xbf16>
    %157 = math.exp %156 : vector<16x64xbf16>
    %158 = vector.extract_strided_slice %115 {offsets = [0, 0], sizes = [1, 16], strides = [1, 1]} : vector<8x16xf32> to vector<1x16xf32>
    %159 = vector.extract_strided_slice %113 {offsets = [0, 0], sizes = [1, 64], strides = [1, 1]} : vector<8x64xf32> to vector<1x64xf32>
    %cst_57 = arith.constant dense<0.000000e+00> : vector<16x64xf32>
    %160 = tpu.matmul %158, %159, %cst_57 {dimension_numbers = #tpu.dot_dimension_numbers<[0], [0], [1], [1], [0, 1, 1, 1], [], []>} : vector<1x16xf32>, vector<1x64xf32>, vector<16x64xf32> -> vector<16x64xf32>
    %161 = vector.extract_strided_slice %115 {offsets = [1, 0], sizes = [1, 16], strides = [1, 1]} : vector<8x16xf32> to vector<1x16xf32>
    %162 = vector.extract_strided_slice %113 {offsets = [1, 0], sizes = [1, 64], strides = [1, 1]} : vector<8x64xf32> to vector<1x64xf32>
    %cst_58 = arith.constant dense<0.000000e+00> : vector<16x64xf32>
    %163 = tpu.matmul %161, %162, %cst_58 {dimension_numbers = #tpu.dot_dimension_numbers<[0], [0], [1], [1], [0, 1, 1, 1], [], []>} : vector<1x16xf32>, vector<1x64xf32>, vector<16x64xf32> -> vector<16x64xf32>
    %164 = vector.extract_strided_slice %115 {offsets = [2, 0], sizes = [1, 16], strides = [1, 1]} : vector<8x16xf32> to vector<1x16xf32>
    %165 = vector.extract_strided_slice %113 {offsets = [2, 0], sizes = [1, 64], strides = [1, 1]} : vector<8x64xf32> to vector<1x64xf32>
    %cst_59 = arith.constant dense<0.000000e+00> : vector<16x64xf32>
    %166 = tpu.matmul %164, %165, %cst_59 {dimension_numbers = #tpu.dot_dimension_numbers<[0], [0], [1], [1], [0, 1, 1, 1], [], []>} : vector<1x16xf32>, vector<1x64xf32>, vector<16x64xf32> -> vector<16x64xf32>
    %167 = vector.extract_strided_slice %115 {offsets = [3, 0], sizes = [1, 16], strides = [1, 1]} : vector<8x16xf32> to vector<1x16xf32>
    %168 = vector.extract_strided_slice %113 {offsets = [3, 0], sizes = [1, 64], strides = [1, 1]} : vector<8x64xf32> to vector<1x64xf32>
    %cst_60 = arith.constant dense<0.000000e+00> : vector<16x64xf32>
    %169 = tpu.matmul %167, %168, %cst_60 {dimension_numbers = #tpu.dot_dimension_numbers<[0], [0], [1], [1], [0, 1, 1, 1], [], []>} : vector<1x16xf32>, vector<1x64xf32>, vector<16x64xf32> -> vector<16x64xf32>
    %170 = vector.extract_strided_slice %115 {offsets = [4, 0], sizes = [1, 16], strides = [1, 1]} : vector<8x16xf32> to vector<1x16xf32>
    %171 = vector.extract_strided_slice %113 {offsets = [4, 0], sizes = [1, 64], strides = [1, 1]} : vector<8x64xf32> to vector<1x64xf32>
    %cst_61 = arith.constant dense<0.000000e+00> : vector<16x64xf32>
    %172 = tpu.matmul %170, %171, %cst_61 {dimension_numbers = #tpu.dot_dimension_numbers<[0], [0], [1], [1], [0, 1, 1, 1], [], []>} : vector<1x16xf32>, vector<1x64xf32>, vector<16x64xf32> -> vector<16x64xf32>
    %173 = vector.extract_strided_slice %115 {offsets = [5, 0], sizes = [1, 16], strides = [1, 1]} : vector<8x16xf32> to vector<1x16xf32>
    %174 = vector.extract_strided_slice %113 {offsets = [5, 0], sizes = [1, 64], strides = [1, 1]} : vector<8x64xf32> to vector<1x64xf32>
    %cst_62 = arith.constant dense<0.000000e+00> : vector<16x64xf32>
    %175 = tpu.matmul %173, %174, %cst_62 {dimension_numbers = #tpu.dot_dimension_numbers<[0], [0], [1], [1], [0, 1, 1, 1], [], []>} : vector<1x16xf32>, vector<1x64xf32>, vector<16x64xf32> -> vector<16x64xf32>
    %176 = vector.extract_strided_slice %115 {offsets = [6, 0], sizes = [1, 16], strides = [1, 1]} : vector<8x16xf32> to vector<1x16xf32>
    %177 = vector.extract_strided_slice %113 {offsets = [6, 0], sizes = [1, 64], strides = [1, 1]} : vector<8x64xf32> to vector<1x64xf32>
    %cst_63 = arith.constant dense<0.000000e+00> : vector<16x64xf32>
    %178 = tpu.matmul %176, %177, %cst_63 {dimension_numbers = #tpu.dot_dimension_numbers<[0], [0], [1], [1], [0, 1, 1, 1], [], []>} : vector<1x16xf32>, vector<1x64xf32>, vector<16x64xf32> -> vector<16x64xf32>
    %179 = vector.extract_strided_slice %115 {offsets = [7, 0], sizes = [1, 16], strides = [1, 1]} : vector<8x16xf32> to vector<1x16xf32>
    %180 = vector.extract_strided_slice %113 {offsets = [7, 0], sizes = [1, 64], strides = [1, 1]} : vector<8x64xf32> to vector<1x64xf32>
    %cst_64 = arith.constant dense<0.000000e+00> : vector<16x64xf32>
    %181 = tpu.matmul %179, %180, %cst_64 {dimension_numbers = #tpu.dot_dimension_numbers<[0], [0], [1], [1], [0, 1, 1, 1], [], []>} : vector<1x16xf32>, vector<1x64xf32>, vector<16x64xf32> -> vector<16x64xf32>
    %182 = arith.extf %122 : vector<16x64xbf16> to vector<16x64xf32>
    %183 = arith.mulf %182, %107 : vector<16x64xf32>
    %184 = arith.addf %183, %160 : vector<16x64xf32>
    %185 = arith.extf %127 : vector<16x64xbf16> to vector<16x64xf32>
    %186 = arith.mulf %185, %184 : vector<16x64xf32>
    %187 = arith.addf %186, %163 : vector<16x64xf32>
    %188 = arith.extf %132 : vector<16x64xbf16> to vector<16x64xf32>
    %189 = arith.mulf %188, %187 : vector<16x64xf32>
    %190 = arith.addf %189, %166 : vector<16x64xf32>
    %191 = arith.extf %137 : vector<16x64xbf16> to vector<16x64xf32>
    %192 = arith.mulf %191, %190 : vector<16x64xf32>
    %193 = arith.addf %192, %169 : vector<16x64xf32>
    %194 = arith.extf %142 : vector<16x64xbf16> to vector<16x64xf32>
    %195 = arith.mulf %194, %193 : vector<16x64xf32>
    %196 = arith.addf %195, %172 : vector<16x64xf32>
    %197 = arith.extf %147 : vector<16x64xbf16> to vector<16x64xf32>
    %198 = arith.mulf %197, %196 : vector<16x64xf32>
    %199 = arith.addf %198, %175 : vector<16x64xf32>
    %200 = arith.extf %152 : vector<16x64xbf16> to vector<16x64xf32>
    %201 = arith.mulf %200, %199 : vector<16x64xf32>
    %202 = arith.addf %201, %178 : vector<16x64xf32>
    %203 = arith.extf %157 : vector<16x64xbf16> to vector<16x64xf32>
    %204 = arith.mulf %203, %202 : vector<16x64xf32>
    %205 = arith.addf %204, %181 : vector<16x64xf32>
    %206 = vector.extract_strided_slice %117 {offsets = [0, 0], sizes = [1, 16], strides = [1, 1]} : vector<8x16xf32> to vector<1x16xf32>
    %cst_65 = arith.constant dense<0.000000e+00> : vector<1x64xf32>
    %207 = tpu.matmul %206, %184, %cst_65 {dimension_numbers = #tpu.dot_dimension_numbers<[1], [0], [0], [1], [0, 0, 1, 1], [], []>} : vector<1x16xf32>, vector<16x64xf32>, vector<1x64xf32> -> vector<1x64xf32>
    %208 = vector.extract_strided_slice %117 {offsets = [1, 0], sizes = [1, 16], strides = [1, 1]} : vector<8x16xf32> to vector<1x16xf32>
    %cst_66 = arith.constant dense<0.000000e+00> : vector<1x64xf32>
    %209 = tpu.matmul %208, %187, %cst_66 {dimension_numbers = #tpu.dot_dimension_numbers<[1], [0], [0], [1], [0, 0, 1, 1], [], []>} : vector<1x16xf32>, vector<16x64xf32>, vector<1x64xf32> -> vector<1x64xf32>
    %210 = vector.extract_strided_slice %117 {offsets = [2, 0], sizes = [1, 16], strides = [1, 1]} : vector<8x16xf32> to vector<1x16xf32>
    %cst_67 = arith.constant dense<0.000000e+00> : vector<1x64xf32>
    %211 = tpu.matmul %210, %190, %cst_67 {dimension_numbers = #tpu.dot_dimension_numbers<[1], [0], [0], [1], [0, 0, 1, 1], [], []>} : vector<1x16xf32>, vector<16x64xf32>, vector<1x64xf32> -> vector<1x64xf32>
    %212 = vector.extract_strided_slice %117 {offsets = [3, 0], sizes = [1, 16], strides = [1, 1]} : vector<8x16xf32> to vector<1x16xf32>
    %cst_68 = arith.constant dense<0.000000e+00> : vector<1x64xf32>
    %213 = tpu.matmul %212, %193, %cst_68 {dimension_numbers = #tpu.dot_dimension_numbers<[1], [0], [0], [1], [0, 0, 1, 1], [], []>} : vector<1x16xf32>, vector<16x64xf32>, vector<1x64xf32> -> vector<1x64xf32>
    %214 = vector.extract_strided_slice %117 {offsets = [4, 0], sizes = [1, 16], strides = [1, 1]} : vector<8x16xf32> to vector<1x16xf32>
    %cst_69 = arith.constant dense<0.000000e+00> : vector<1x64xf32>
    %215 = tpu.matmul %214, %196, %cst_69 {dimension_numbers = #tpu.dot_dimension_numbers<[1], [0], [0], [1], [0, 0, 1, 1], [], []>} : vector<1x16xf32>, vector<16x64xf32>, vector<1x64xf32> -> vector<1x64xf32>
    %216 = vector.extract_strided_slice %117 {offsets = [5, 0], sizes = [1, 16], strides = [1, 1]} : vector<8x16xf32> to vector<1x16xf32>
    %cst_70 = arith.constant dense<0.000000e+00> : vector<1x64xf32>
    %217 = tpu.matmul %216, %199, %cst_70 {dimension_numbers = #tpu.dot_dimension_numbers<[1], [0], [0], [1], [0, 0, 1, 1], [], []>} : vector<1x16xf32>, vector<16x64xf32>, vector<1x64xf32> -> vector<1x64xf32>
    %218 = vector.extract_strided_slice %117 {offsets = [6, 0], sizes = [1, 16], strides = [1, 1]} : vector<8x16xf32> to vector<1x16xf32>
    %cst_71 = arith.constant dense<0.000000e+00> : vector<1x64xf32>
    %219 = tpu.matmul %218, %202, %cst_71 {dimension_numbers = #tpu.dot_dimension_numbers<[1], [0], [0], [1], [0, 0, 1, 1], [], []>} : vector<1x16xf32>, vector<16x64xf32>, vector<1x64xf32> -> vector<1x64xf32>
    %220 = vector.extract_strided_slice %117 {offsets = [7, 0], sizes = [1, 16], strides = [1, 1]} : vector<8x16xf32> to vector<1x16xf32>
    %cst_72 = arith.constant dense<0.000000e+00> : vector<1x64xf32>
    %221 = tpu.matmul %220, %205, %cst_72 {dimension_numbers = #tpu.dot_dimension_numbers<[1], [0], [0], [1], [0, 0, 1, 1], [], []>} : vector<1x16xf32>, vector<16x64xf32>, vector<1x64xf32> -> vector<1x64xf32>
    %222 = tpu.concatenate %207, %209, %211, %213, %215, %217, %219, %221 in 0 : vector<1x64xf32>, vector<1x64xf32>, vector<1x64xf32>, vector<1x64xf32>, vector<1x64xf32>, vector<1x64xf32>, vector<1x64xf32>, vector<1x64xf32> -> vector<8x64xf32>
    %223 = arith.index_cast %109 : i32 to index
    %c0_73 = arith.constant 0 : index
    %224 = vector.load %arg16[%223, %c0_73] : memref<8x64xf32, #tpu.memory_space<vmem>>, vector<8x64xf32>
    tpu.vector_store %arg16[%223, %c0_73], %222 {strides = array<i32>} : memref<8x64xf32, #tpu.memory_space<vmem>>, vector<8x64xf32>,
    %c1_i32_74 = arith.constant 1 : i32
    %c0_75 = arith.constant 0 : index
    %c0_76 = arith.constant 0 : index
    %225 = vector.load %arg16[%c0_75, %c0_76] : memref<8x64xf32, #tpu.memory_space<vmem>>, vector<8x64xf32>
    %c0_77 = arith.constant 0 : index
    %c0_78 = arith.constant 0 : index
    %226 = vector.load %arg9[%c0_77, %c0_78] : memref<1x64xf32, #tpu.memory_space<vmem>>, vector<1x64xf32>
    %227 = vector.broadcast %226 : vector<1x64xf32> to vector<8x64xf32>
    %228 = arith.mulf %67, %227 : vector<8x64xf32>
    %229 = arith.addf %225, %228 : vector<8x64xf32>
    %230 = arith.negf %5 : vector<8x64xf32>
    %231 = math.exp %230 : vector<8x64xf32>
    %cst_79 = arith.constant 1.000000e+00 : f32
    %232 = vector.broadcast %cst_79 : f32 to vector<8x64xf32>
    %233 = arith.addf %232, %231 : vector<8x64xf32>
    %234 = arith.divf %232, %233 : vector<8x64xf32>
    %235 = arith.mulf %5, %234 : vector<8x64xf32>
    %236 = arith.mulf %229, %235 : vector<8x64xf32>
    %237 = arith.truncf %236 : vector<8x64xf32> to vector<8x64xbf16>
    %c0_80 = arith.constant 0 : index
    %c0_81 = arith.constant 0 : index
    %238 = vector.load %arg10[%c0_80, %c0_81] : memref<64x32xbf16, #tpu.memory_space<vmem>>, vector<64x32xbf16>
    %cst_82 = arith.constant dense<0.000000e+00> : vector<8x32xf32>
    %239 = tpu.matmul %237, %238, %cst_82 {dimension_numbers = #tpu.dot_dimension_numbers<[1], [0], [0], [1], [0, 0, 1, 1], [], []>} : vector<8x64xbf16>, vector<64x32xbf16>, vector<8x32xf32> -> vector<8x32xf32>
    %240 = vector.shape_cast %239 : vector<8x32xf32> to vector<1x8x32xf32>
    %c0_83 = arith.constant 0 : index
    %c0_84 = arith.constant 0 : index
    %c0_85 = arith.constant 0 : index
    %241 = vector.load %arg11[%c0_83, %c0_84, %c0_85] : memref<1x8x32xf32, #tpu.memory_space<vmem>>, vector<1x8x32xf32>
    tpu.vector_store %arg11[%c0_83, %c0_84, %c0_85], %240 {strides = array<i32>} : memref<1x8x32xf32, #tpu.memory_space<vmem>>, vector<1x8x32xf32>,
    return
  }
  func.func @transform_0(%arg0: i32) -> (i32, i32, i32) {
    %c0_i32 = arith.constant 0 : i32
    %c0_i32_0 = arith.constant 0 : i32
    %c0_i32_1 = arith.constant 0 : i32
    return %arg0, %c0_i32, %c0_i32_0 : i32, i32, i32
  }
  func.func @transform_1(%arg0: i32) -> (i32, i32) {
    %c0_i32 = arith.constant 0 : i32
    %c0_i32_0 = arith.constant 0 : i32
    %c0_i32_1 = arith.constant 0 : i32
    return %c0_i32, %c0_i32_0 : i32, i32
  }
  func.func @transform_2(%arg0: i32) -> (i32, i32) {
    %c0_i32 = arith.constant 0 : i32
    %c0_i32_0 = arith.constant 0 : i32
    %c0_i32_1 = arith.constant 0 : i32
    return %c0_i32, %c0_i32_0 : i32, i32
  }
  func.func @transform_3(%arg0: i32) -> (i32, i32) {
    %c0_i32 = arith.constant 0 : i32
    %c0_i32_0 = arith.constant 0 : i32
    %c0_i32_1 = arith.constant 0 : i32
    return %c0_i32, %c0_i32_0 : i32, i32
  }
  func.func @transform_4(%arg0: i32) -> (i32, i32) {
    %c0_i32 = arith.constant 0 : i32
    %c0_i32_0 = arith.constant 0 : i32
    %c0_i32_1 = arith.constant 0 : i32
    return %c0_i32, %c0_i32_0 : i32, i32
  }
  func.func @transform_5(%arg0: i32) -> (i32, i32) {
    %c0_i32 = arith.constant 0 : i32
    %c0_i32_0 = arith.constant 0 : i32
    %c0_i32_1 = arith.constant 0 : i32
    return %c0_i32, %c0_i32_0 : i32, i32
  }
  func.func @transform_6(%arg0: i32) -> (i32, i32) {
    %c0_i32 = arith.constant 0 : i32
    %c0_i32_0 = arith.constant 0 : i32
    %c0_i32_1 = arith.constant 0 : i32
    return %c0_i32, %c0_i32_0 : i32, i32
  }
  func.func @transform_7(%arg0: i32) -> (i32, i32) {
    %c0_i32 = arith.constant 0 : i32
    %c0_i32_0 = arith.constant 0 : i32
    %c0_i32_1 = arith.constant 0 : i32
    return %c0_i32, %c0_i32_0 : i32, i32
  }
  func.func @transform_8(%arg0: i32) -> (i32, i32) {
    %c0_i32 = arith.constant 0 : i32
    %c0_i32_0 = arith.constant 0 : i32
    %c0_i32_1 = arith.constant 0 : i32
    return %c0_i32, %c0_i32_0 : i32, i32
  }
  func.func @transform_9(%arg0: i32) -> (i32, i32) {
    %c0_i32 = arith.constant 0 : i32
    %c0_i32_0 = arith.constant 0 : i32
    %c0_i32_1 = arith.constant 0 : i32
    return %c0_i32, %c0_i32_0 : i32, i32
  }
  func.func @transform_10(%arg0: i32) -> (i32, i32, i32) {
    %c0_i32 = arith.constant 0 : i32
    %c0_i32_0 = arith.constant 0 : i32
    %c0_i32_1 = arith.constant 0 : i32
    return %arg0, %c0_i32, %c0_i32_0 : i32, i32, i32
  }
}

</mosaic_0001>

<llo_original>
// kernel: mamba_block_pallas.1
$region0: #{mamba_block_pallas.1}
  #allocation0 [shape = 'u32[]', space=smem, size = 0x4, offset = 0x4, fixed_abs, tag = 'smem constant byte address 0x4 - core index']
  #allocation1 [shape = 'u32[144,128]{1,0:T(1,128)}', space=vmem, size = 0x12000, scoped, tag = 'internal scratch']
  #allocation2 [shape = 'f32[8,64]{1,0:T(8,128)}', space=vmem, size = 0x1000, scoped, tag = 'scratch operand']
  #allocation3 [shape = 'f32[8,64]{1,0:T(8,128)}', space=vmem, size = 0x1000, scoped, tag = 'scratch operand']
  #allocation4 [shape = 'f32[8,16]{1,0:T(8,128)}', space=vmem, size = 0x1000, scoped, tag = 'scratch operand']
  #allocation5 [shape = 'f32[8,16]{1,0:T(8,128)}', space=vmem, size = 0x1000, scoped, tag = 'scratch operand']
  #allocation6 [shape = 'f32[8,64]{1,0:T(8,128)}', space=vmem, size = 0x1000, scoped, tag = 'scratch operand']
  %s0 = inlined_call_operand.vmem [shape: bf16[2,8,32], index: 0, kind: input, shape index: {}]
  %s1 = inlined_call_operand.vmem [shape: bf16[32,128], index: 1, kind: input, shape index: {}]
  %s2 = inlined_call_operand.vmem [shape: f32[4,64], index: 2, kind: input, shape index: {}]
  %s3 = inlined_call_operand.vmem [shape: f32[1,64], index: 3, kind: input, shape index: {}]
  %s4 = inlined_call_operand.vmem [shape: bf16[64,34], index: 4, kind: input, shape index: {}]
  %s5 = inlined_call_operand.vmem [shape: bf16[2,64], index: 5, kind: input, shape index: {}]
  %s6 = inlined_call_operand.vmem [shape: f32[1,64], index: 6, kind: input, shape index: {}]
  %s7 = inlined_call_operand.vmem [shape: f32[16,64], index: 7, kind: input, shape index: {}]
  %s8 = inlined_call_operand.vmem [shape: f32[1,64], index: 8, kind: input, shape index: {}]
  %s9 = inlined_call_operand.vmem [shape: bf16[64,32], index: 9, kind: input, shape index: {}]
  %s10 = inlined_call_operand.hbm [shape: f32[2,8,32], index: 10, kind: output, shape index: {}]
  %s11 = sld [smem:[#allocation0]]
  $region73: #{mamba_block_pallas.1} parent=0
    _
  %s13 = ssub.s32 1, %s11
  %s14 = scalar_select 0, %s13, %s11
  $region1: #{mamba_block_pallas.1} parent=0
    #allocation7 [shape = 'u8[8192]{0}', space=vmem, size = 0x2000, scoped, tag = 'output window, operand 0']
    #allocation8 [shape = 's32[2]{0}', space=sflag, size = 0x8, scoped, tag = 'scoped memory for mamba_block_pallas.1']
    %15 = vsyncpa [#allocation8], 0
    %s16 = scalar_lea.sflag [#allocation8], 1
    %17 = vsyncpa %s16, 0
    loop: start=0, step=1, limit=4
    $region2: #{mamba_block_pallas.1} parent=1 // loop_pre_header
      _
    $region3: #{mamba_block_pallas.1} parent=1 // loop_header
      %s19 = sphi 0, %s23
      %p20 = scmp.ge.s32.totalorder %s19, 4
      %s29 = sphi 0, %s31
      %s32 = sphi 0, %s29
      %s33 = sphi 0, %s32
      %s49 = sphi 0, %s33
      %s53 = sphi 0, %s53
      %s55 = sphi 0, %s53
      %s56 = sphi 0, %s55
      %s70 = sphi 0, %s56
      %s74 = sphi 0, %s74
      %s76 = sphi 0, %s74
      %s77 = sphi 0, %s76
      %s91 = sphi 0, %s77
      %s95 = sphi 0, %s95
      %s97 = sphi 0, %s95
      %s98 = sphi 0, %s97
      %s112 = sphi 0, %s98
      %s116 = sphi 0, %s116
      %s118 = sphi 0, %s116
      %s119 = sphi 0, %s118
      %s133 = sphi 0, %s119
      %s137 = sphi 0, %s137
      %s139 = sphi 0, %s137
      %s140 = sphi 0, %s139
      %s154 = sphi 0, %s140
      %s158 = sphi 0, %s158
      %s160 = sphi 0, %s158
      %s161 = sphi 0, %s160
      %s175 = sphi 0, %s161
      %s179 = sphi 0, %s179
      %s181 = sphi 0, %s179
      %s182 = sphi 0, %s181
      %s196 = sphi 0, %s182
      %s200 = sphi 0, %s200
      %s202 = sphi 0, %s200
      %s203 = sphi 0, %s202
      %s217 = sphi 0, %s203
      %s221 = sphi 0, %s221
      %s223 = sphi 0, %s221
      %s224 = sphi 0, %s223
      %s238 = sphi 0, %s224
      %s244 = sphi 0, %s246
      %s247 = sphi 0, %s244
      %s248 = sphi 0, %s247
      %s264 = sphi 0, %s248
    $region4: #{mamba_block_pallas.1} parent=1 // loop_header_branch
      %22 = sbr.rel (%p20) target = $region8
    $region5: #{mamba_block_pallas.1} parent=1 // loop_body
      %s24 = ssub.s32 %s19, 1
      %s25 = ssub.s32 %s19, 2
      %s26 = sadd.s32 %s19, 1
      %s27 = ssub.s32 %s19, %s26
      %p28 = scmp.eq.s32.totalorder %s27, 0
      %s30 = sadd.s32 %s29, 1
      %s31 = scalar_select %p28, %s29, %s30
      %p34 = pneg %p28
      %p35 = scmp.eq.s32.totalorder %s19, 1
      %p36 = por %p34, %p35
      %p37 = scmp.ne.s32.totalorder %s29, %s32
      %p38 = scmp.eq.s32.totalorder %s19, 0
      %p39 = por %p37, %p38
      %p40 = scmp.ne.s32.totalorder %s29, %s32
      %p41 = scmp.eq.s32.totalorder %s24, 1
      %p42 = por %p40, %p41
      %p43 = scmp.ne.s32.totalorder %s32, %s33
      %p44 = scmp.eq.s32.totalorder %s24, 0
      %p45 = por %p43, %p44
      %p46 = scmp.ne.s32.totalorder %s32, %s33
      %p47 = scmp.eq.s32.totalorder %s25, 1
      %p48 = por %p46, %p47
      %p50 = scmp.ne.s32.totalorder %s33, %s49
      %p51 = scmp.eq.s32.totalorder %s25, 0
      %p52 = por %p50, %p51
      %s54 = sadd.s32 %s53, 1
      %p57 = scmp.eq.s32.totalorder %s19, 1
      %p58 = scmp.ne.s32.totalorder %s53, %s55
      %p59 = scmp.eq.s32.totalorder %s19, 0
      %p60 = por %p58, %p59
      %p61 = scmp.ne.s32.totalorder %s53, %s55
      %p62 = scmp.eq.s32.totalorder %s24, 1
      %p63 = por %p61, %p62
      %p64 = scmp.ne.s32.totalorder %s55, %s56
      %p65 = scmp.eq.s32.totalorder %s24, 0
      %p66 = por %p64, %p65
      %p67 = scmp.ne.s32.totalorder %s55, %s56
      %p68 = scmp.eq.s32.totalorder %s25, 1
      %p69 = por %p67, %p68
      %p71 = scmp.ne.s32.totalorder %s56, %s70
      %p72 = scmp.eq.s32.totalorder %s25, 0
      %p73 = por %p71, %p72
      %s75 = sadd.s32 %s74, 1
      %p78 = scmp.eq.s32.totalorder %s19, 1
      %p79 = scmp.ne.s32.totalorder %s74, %s76
      %p80 = scmp.eq.s32.totalorder %s19, 0
      %p81 = por %p79, %p80
      %p82 = scmp.ne.s32.totalorder %s74, %s76
      %p83 = scmp.eq.s32.totalorder %s24, 1
      %p84 = por %p82, %p83
      %p85 = scmp.ne.s32.totalorder %s76, %s77
      %p86 = scmp.eq.s32.totalorder %s24, 0
      %p87 = por %p85, %p86
      %p88 = scmp.ne.s32.totalorder %s76, %s77
      %p89 = scmp.eq.s32.totalorder %s25, 1
      %p90 = por %p88, %p89
      %p92 = scmp.ne.s32.totalorder %s77, %s91
      %p93 = scmp.eq.s32.totalorder %s25, 0
      %p94 = por %p92, %p93
      %s96 = sadd.s32 %s95, 1
      %p99 = scmp.eq.s32.totalorder %s19, 1
      %p100 = scmp.ne.s32.totalorder %s95, %s97
      %p101 = scmp.eq.s32.totalorder %s19, 0
      %p102 = por %p100, %p101
      %p103 = scmp.ne.s32.totalorder %s95, %s97
      %p104 = scmp.eq.s32.totalorder %s24, 1
      %p105 = por %p103, %p104
      %p106 = scmp.ne.s32.totalorder %s97, %s98
      %p107 = scmp.eq.s32.totalorder %s24, 0
      %p108 = por %p106, %p107
      %p109 = scmp.ne.s32.totalorder %s97, %s98
      %p110 = scmp.eq.s32.totalorder %s25, 1
      %p111 = por %p109, %p110
      %p113 = scmp.ne.s32.totalorder %s98, %s112
      %p114 = scmp.eq.s32.totalorder %s25, 0
      %p115 = por %p113, %p114
      %s117 = sadd.s32 %s116, 1
      %p120 = scmp.eq.s32.totalorder %s19, 1
      %p121 = scmp.ne.s32.totalorder %s116, %s118
      %p122 = scmp.eq.s32.totalorder %s19, 0
      %p123 = por %p121, %p122
      %p124 = scmp.ne.s32.totalorder %s116, %s118
      %p125 = scmp.eq.s32.totalorder %s24, 1
      %p126 = por %p124, %p125
      %p127 = scmp.ne.s32.totalorder %s118, %s119
      %p128 = scmp.eq.s32.totalorder %s24, 0
      %p129 = por %p127, %p128
      %p130 = scmp.ne.s32.totalorder %s118, %s119
      %p131 = scmp.eq.s32.totalorder %s25, 1
      %p132 = por %p130, %p131
      %p134 = scmp.ne.s32.totalorder %s119, %s133
      %p135 = scmp.eq.s32.totalorder %s25, 0
      %p136 = por %p134, %p135
      %s138 = sadd.s32 %s137, 1
      %p141 = scmp.eq.s32.totalorder %s19, 1
      %p142 = scmp.ne.s32.totalorder %s137, %s139
      %p143 = scmp.eq.s32.totalorder %s19, 0
      %p144 = por %p142, %p143
      %p145 = scmp.ne.s32.totalorder %s137, %s139
      %p146 = scmp.eq.s32.totalorder %s24, 1
      %p147 = por %p145, %p146
      %p148 = scmp.ne.s32.totalorder %s139, %s140
      %p149 = scmp.eq.s32.totalorder %s24, 0
      %p150 = por %p148, %p149
      %p151 = scmp.ne.s32.totalorder %s139, %s140
      %p152 = scmp.eq.s32.totalorder %s25, 1
      %p153 = por %p151, %p152
      %p155 = scmp.ne.s32.totalorder %s140, %s154
      %p156 = scmp.eq.s32.totalorder %s25, 0
      %p157 = por %p155, %p156
      %s159 = sadd.s32 %s158, 1
      %p162 = scmp.eq.s32.totalorder %s19, 1
      %p163 = scmp.ne.s32.totalorder %s158, %s160
      %p164 = scmp.eq.s32.totalorder %s19, 0
      %p165 = por %p163, %p164
      %p166 = scmp.ne.s32.totalorder %s158, %s160
      %p167 = scmp.eq.s32.totalorder %s24, 1
      %p168 = por %p166, %p167
      %p169 = scmp.ne.s32.totalorder %s160, %s161
      %p170 = scmp.eq.s32.totalorder %s24, 0
      %p171 = por %p169, %p170
      %p172 = scmp.ne.s32.totalorder %s160, %s161
      %p173 = scmp.eq.s32.totalorder %s25, 1
      %p174 = por %p172, %p173
      %p176 = scmp.ne.s32.totalorder %s161, %s175
      %p177 = scmp.eq.s32.totalorder %s25, 0
      %p178 = por %p176, %p177
      %s180 = sadd.s32 %s179, 1
      %p183 = scmp.eq.s32.totalorder %s19, 1
      %p184 = scmp.ne.s32.totalorder %s179, %s181
      %p185 = scmp.eq.s32.totalorder %s19, 0
      %p186 = por %p184, %p185
      %p187 = scmp.ne.s32.totalorder %s179, %s181
      %p188 = scmp.eq.s32.totalorder %s24, 1
      %p189 = por %p187, %p188
      %p190 = scmp.ne.s32.totalorder %s181, %s182
      %p191 = scmp.eq.s32.totalorder %s24, 0
      %p192 = por %p190, %p191
      %p193 = scmp.ne.s32.totalorder %s181, %s182
      %p194 = scmp.eq.s32.totalorder %s25, 1
      %p195 = por %p193, %p194
      %p197 = scmp.ne.s32.totalorder %s182, %s196
      %p198 = scmp.eq.s32.totalorder %s25, 0
      %p199 = por %p197, %p198
      %s201 = sadd.s32 %s200, 1
      %p204 = scmp.eq.s32.totalorder %s19, 1
      %p205 = scmp.ne.s32.totalorder %s200, %s202
      %p206 = scmp.eq.s32.totalorder %s19, 0
      %p207 = por %p205, %p206
      %p208 = scmp.ne.s32.totalorder %s200, %s202
      %p209 = scmp.eq.s32.totalorder %s24, 1
      %p210 = por %p208, %p209
      %p211 = scmp.ne.s32.totalorder %s202, %s203
      %p212 = scmp.eq.s32.totalorder %s24, 0
      %p213 = por %p211, %p212
      %p214 = scmp.ne.s32.totalorder %s202, %s203
      %p215 = scmp.eq.s32.totalorder %s25, 1
      %p216 = por %p214, %p215
      %p218 = scmp.ne.s32.totalorder %s203, %s217
      %p219 = scmp.eq.s32.totalorder %s25, 0
      %p220 = por %p218, %p219
      %s222 = sadd.s32 %s221, 1
      %p225 = scmp.eq.s32.totalorder %s19, 1
      %p226 = scmp.ne.s32.totalorder %s221, %s223
      %p227 = scmp.eq.s32.totalorder %s19, 0
      %p228 = por %p226, %p227
      %p229 = scmp.ne.s32.totalorder %s221, %s223
      %p230 = scmp.eq.s32.totalorder %s24, 1
      %p231 = por %p229, %p230
      %p232 = scmp.ne.s32.totalorder %s223, %s224
      %p233 = scmp.eq.s32.totalorder %s24, 0
      %p234 = por %p232, %p233
      %p235 = scmp.ne.s32.totalorder %s223, %s224
      %p236 = scmp.eq.s32.totalorder %s25, 1
      %p237 = por %p235, %p236
      %p239 = scmp.ne.s32.totalorder %s224, %s238
      %p240 = scmp.eq.s32.totalorder %s25, 0
      %p241 = por %p239, %p240
      %s242 = ssub.s32 %s19, %s26
      %p243 = scmp.eq.s32.totalorder %s242, 0
      %s245 = sadd.s32 %s244, 1
      %s246 = scalar_select %p243, %s244, %s245
      %p249 = pneg %p243
      %p250 = scmp.eq.s32.totalorder %s19, 1
      %p251 = por %p249, %p250
      %p252 = scmp.ne.s32.totalorder %s244, %s247
      %p253 = scmp.eq.s32.totalorder %s19, 0
      %p254 = por %p252, %p253
      %p255 = scmp.ne.s32.totalorder %s244, %s247
      %p256 = scmp.eq.s32.totalorder %s24, 1
      %p257 = por %p255, %p256
      %p258 = scmp.ne.s32.totalorder %s247, %s248
      %p259 = scmp.eq.s32.totalorder %s24, 0
      %p260 = por %p258, %p259
      %p261 = scmp.ne.s32.totalorder %s247, %s248
      %p262 = scmp.eq.s32.totalorder %s25, 1
      %p263 = por %p261, %p262
      %p265 = scmp.ne.s32.totalorder %s248, %s264
      %p266 = scmp.eq.s32.totalorder %s25, 0
      %p267 = por %p265, %p266
      %p268 = scmp.le.s32.totalorder 1, %s19
      %p269 = scmp.lt.s32.totalorder %s19, 3
      %p270 = pnand %p268, %p269
      %p271 = pneg %p270
      // Predicated region
      $region9: #{mamba_block_pallas.1} parent=5 // pred_check
        _
      $region10: #{mamba_block_pallas.1} parent=5 // pred_check_branch
        %273 = sbr.rel (%p270) target = $region12
      $region11: #{mamba_block_pallas.1} parent=5 // pred_region
        %s274 = ssub.s32 %s19, 1
        // Predicated region
        $region13: #{mamba_block_pallas.1} parent=11 // pred_check
          %p275 = pneg %p66
        $region14: #{mamba_block_pallas.1} parent=11 // pred_check_branch
          %277 = sbr.rel (%p275) target = $region16
        $region15: #{mamba_block_pallas.1} parent=11 // pred_region
          _
        $region16: #{mamba_block_pallas.1} parent=11 // pred_fallthru
          _
        // Predicated region
        $region17: #{mamba_block_pallas.1} parent=11 // pred_check
          %p278 = pneg %p87
        $region18: #{mamba_block_pallas.1} parent=11 // pred_check_branch
          %280 = sbr.rel (%p278) target = $region20
        $region19: #{mamba_block_pallas.1} parent=11 // pred_region
          _
        $region20: #{mamba_block_pallas.1} parent=11 // pred_fallthru
          _
        // Predicated region
        $region21: #{mamba_block_pallas.1} parent=11 // pred_check
          %p281 = pneg %p108
        $region22: #{mamba_block_pallas.1} parent=11 // pred_check_branch
          %283 = sbr.rel (%p281) target = $region24
        $region23: #{mamba_block_pallas.1} parent=11 // pred_region
          _
        $region24: #{mamba_block_pallas.1} parent=11 // pred_fallthru
          _
        // Predicated region
        $region25: #{mamba_block_pallas.1} parent=11 // pred_check
          %p284 = pneg %p129
        $region26: #{mamba_block_pallas.1} parent=11 // pred_check_branch
          %286 = sbr.rel (%p284) target = $region28
        $region27: #{mamba_block_pallas.1} parent=11 // pred_region
          _
        $region28: #{mamba_block_pallas.1} parent=11 // pred_fallthru
          _
        // Predicated region
        $region29: #{mamba_block_pallas.1} parent=11 // pred_check
          %p287 = pneg %p150
        $region30: #{mamba_block_pallas.1} parent=11 // pred_check_branch
          %289 = sbr.rel (%p287) target = $region32
        $region31: #{mamba_block_pallas.1} parent=11 // pred_region
          _
        $region32: #{mamba_block_pallas.1} parent=11 // pred_fallthru
          _
        // Predicated region
        $region33: #{mamba_block_pallas.1} parent=11 // pred_check
          %p290 = pneg %p171
        $region34: #{mamba_block_pallas.1} parent=11 // pred_check_branch
          %292 = sbr.rel (%p290) target = $region36
        $region35: #{mamba_block_pallas.1} parent=11 // pred_region
          _
        $region36: #{mamba_block_pallas.1} parent=11 // pred_fallthru
          _
        // Predicated region
        $region37: #{mamba_block_pallas.1} parent=11 // pred_check
          %p293 = pneg %p192
        $region38: #{mamba_block_pallas.1} parent=11 // pred_check_branch
          %295 = sbr.rel (%p293) target = $region40
        $region39: #{mamba_block_pallas.1} parent=11 // pred_region
          _
        $region40: #{mamba_block_pallas.1} parent=11 // pred_fallthru
          _
        // Predicated region
        $region41: #{mamba_block_pallas.1} parent=11 // pred_check
          %p296 = pneg %p213
        $region42: #{mamba_block_pallas.1} parent=11 // pred_check_branch
          %298 = sbr.rel (%p296) target = $region44
        $region43: #{mamba_block_pallas.1} parent=11 // pred_region
          _
        $region44: #{mamba_block_pallas.1} parent=11 // pred_fallthru
          _
        // Predicated region
        $region45: #{mamba_block_pallas.1} parent=11 // pred_check
          %p299 = pneg %p234
        $region46: #{mamba_block_pallas.1} parent=11 // pred_check_branch
          %301 = sbr.rel (%p299) target = $region48
        $region47: #{mamba_block_pallas.1} parent=11 // pred_region
          _
        $region48: #{mamba_block_pallas.1} parent=11 // pred_fallthru
          _
      $region12: #{mamba_block_pallas.1} parent=5 // pred_fallthru
        _
      %p302 = scmp.lt.s32.totalorder %s19, 2
      // Predicated region
      $region49: #{mamba_block_pallas.1} parent=5 // pred_check
        %p303 = pneg %p302
      $region50: #{mamba_block_pallas.1} parent=5 // pred_check_branch
        %305 = sbr.rel (%p303) target = $region52
      $region51: #{mamba_block_pallas.1} parent=5 // pred_region
        // Predicated region
        $region53: #{mamba_block_pallas.1} parent=51 // pred_check
          %p306 = pneg %p39
        $region54: #{mamba_block_pallas.1} parent=51 // pred_check_branch
          %308 = sbr.rel (%p306) target = $region56
        $region55: #{mamba_block_pallas.1} parent=51 // pred_region
          %p309 = scmp.lt.s32.totalorder %s19, 1
          %s310 = scalar_select %p309, %s19, 1
          %s311 = smul.addr %s310, 4
          %s312 = scalar_lea.vmem %s0, %s311
        $region56: #{mamba_block_pallas.1} parent=51 // pred_fallthru
          _
      $region52: #{mamba_block_pallas.1} parent=5 // pred_fallthru
        _
      %p313 = scmp.le.s32.totalorder 1, %s19
      %p314 = scmp.lt.s32.totalorder %s19, 3
      %p315 = pnand %p313, %p314
      %p316 = pneg %p315
      // Predicated region
      $region57: #{mamba_block_pallas.1} parent=5 // pred_check
        _
      $region58: #{mamba_block_pallas.1} parent=5 // pred_check_branch
        %318 = sbr.rel (%p315) target = $region60
      $region59: #{mamba_block_pallas.1} parent=5 // pred_region
        %s319 = ssub.s32 %s19, 1
        %p320 = scmp.lt.s32.totalorder %s24, 1
        %s321 = scalar_select %p320, %s24, 1
        %s322 = smul.addr %s321, 4
        %s323 = scalar_lea.vmem %s0, %s322
        %p324 = pneg %p45
        %p325 = pneg %p42
        %p326 = pneg %p66
        %p327 = pneg %p63
        %p328 = pneg %p87
        %p329 = pneg %p84
        %p330 = pneg %p108
        %p331 = pneg %p105
        %p332 = pneg %p129
        %p333 = pneg %p126
        %p334 = pneg %p150
        %p335 = pneg %p147
        %p336 = pneg %p171
        %p337 = pneg %p168
        %p338 = pneg %p192
        %p339 = pneg %p189
        %p340 = pneg %p213
        %p341 = pneg %p210
        %p342 = pneg %p234
        %p343 = pneg %p231
        %p344 = pneg %p260
        %p345 = pneg %p257
        %s346 = sand.u32 %s247, 1
        %s347 = scalar_lea.sflag [#allocation8], %s346
        %s348 = sand.u32 %s247, 1
        %s349 = smul.addr %s348, 8
        %s350 = scalar_lea.vmem [#allocation7], %s349
        %p351 = scmp.lt.s32.totalorder %s24, 1
        %s352 = scalar_select %p351, %s24, 1
        %s353 = smul.addr %s352, 4
        %s354 = scalar_lea.vmem %s0, %s353
        %v356 = vld [vmem:[%s354] sm:$0xf]
        %v357 = vld [vmem:[%s1] sm:$0xf]
        %v358 = vld [vmem:[%s1 + $0x4] sm:$0xf]
        %v359 = vld [vmem:[%s1 + $0x8] sm:$0xf]
        %v360 = vld [vmem:[%s1 + $0xc] sm:$0xf]
        %v365 = vunpack.c.l.b16 %v357
        %v366 = vunpack.c.l.b16 %v358
        %v367 = vunpack.c.l.b16 %v359
        %v368 = vunpack.c.l.b16 %v360
        %v369 = vpack.c.b16 %v366, %v365
        %v370 = vpack.c.b16 %v368, %v367
        %vm373 = vcmask 261120
        %v375 = vsel %vm373, %v356, 0
        %377 = vmatprep.subr.bf16.mxu0 0
        %378 = vmatpush1.bf16.msra.mxu0 0
        %379 = vmatprep.subr.bf16.mxu0 0
        %380 = vmatpush1.bf16.msra.mxu0 0
        %381 = vmatprep.subr.bf16.mxu0 0
        %382 = vmatpush1.bf16.msra.mxu0 0
        %383 = vmatprep.subr.bf16.mxu0 0
        %384 = vmatpush1.bf16.msra.mxu0 0
        %385 = vmatprep.subr.bf16.mxu0 0
        %386 = vmatpush1.bf16.msra.mxu0 0
        %387 = vmatprep.subr.bf16.mxu0 0
        %388 = vmatpush1.bf16.msra.mxu0 0
        %389 = vmatprep.subr.bf16.mxu0 0
        %390 = vmatpush1.bf16.msra.mxu0 %v370
        %391 = vmatprep.subr.bf16.mxu0 0
        %392 = vmatpush1.bf16.msra.mxu0 %v369
        %393 = vmatprep.subr.bf16.mxu0 0
        %394 = vmatpush2.bf16.msra.mxu0 0
        %395 = vmatprep.subr.bf16.mxu0 0
        %396 = vmatpush2.bf16.msra.mxu0 0
        %397 = vmatprep.subr.bf16.mxu0 0
        %398 = vmatpush2.bf16.msra.mxu0 0
        %399 = vmatprep.subr.bf16.mxu0 0
        %400 = vmatpush2.bf16.msra.mxu0 0
        %401 = vmatprep.subr.bf16.mxu0 0
        %402 = vmatpush2.bf16.msra.mxu0 0
        %403 = vmatprep.subr.bf16.mxu0 0
        %404 = vmatpush2.bf16.msra.mxu0 0
        %405 = vmatprep.subr.bf16.mxu0 0
        %406 = vmatpush2.bf16.msra.mxu0 0
        %407 = vmatprep.subr.bf16.mxu0 0
        %408 = vmatpush2.bf16.msra.mxu0 0
        %409 = vmatprep.mubr.bf16.mxu0 0
        %410 = vmatmul.mubr.bf16.gmra.mxu0 %v375
        %v411 = vpop.f32.mrf.mxu0
        %v412 = vadd.f32 0.0, %v411
        %v413 = vpop.f32.mrf.mxu0
        %v414 = vpop.f32.mrf.mxu0
        %v415 = vpop.f32.mrf.mxu0
        %416 = vdwg.mxu0
        %v417 = vlaneseq
        %v418 = vshrl.u32 %v417, 7
        %vm419 = vcmp.lt.s32.totalorder %v418, 0
        %v420 = vsub.s32 0, %v418
        %v421 = vsel %vm419, %v420, %v418
        %v422 = vshrl.u32 %v421, 3
        %v423 = vand.u32 %v421, 7
        %v424 = vsub.s32 0, %v423
        %v425 = vsel %vm419, %v424, %v423
        %vm426 = vcmp.ne.s32.totalorder %v425, 0
        %vm427 = vcmp.lt.s32.totalorder %v425, 0
        %vm428 = vmand %vm427, %vm426
        %v429 = vadd.s32 %v425, 8
        %v430 = vsel %vm428, %v429, %v425
        %v431 = vld [vmem:[%s2 + $0x3] sm:$0x1]
        %v432 = vlaneseq
        %v433 = vshrl.u32 %v432, 7
        %v434 = vsub.s32 0, %v433
        %v435 = vrot.slane %v431, %v434
        %v436 = vmul.f32 %v412, %v435
        %v437 = vld [vmem:[%s2] sm:$0x1]
        %vm438 = vcmp.ge.s32.totalorder %v430, 3
        %v439 = vrot.slane %v412, 5
        %v440 = vsel %vm438, 1, 0
        %vm441 = vcmp.eq.s32.totalorder %v440, 1
        %v442 = vsel %vm441, %v439, 0.0
        %v443 = vlaneseq
        %v444 = vshrl.u32 %v443, 7
        %v445 = vsub.s32 0, %v444
        %v446 = vrot.slane %v437, %v445
        %v447 = vmul.f32 %v442, %v446
        %v448 = vadd.f32 %v436, %v447
        %v449 = vld [vmem:[%s2 + $0x1] sm:$0x1]
        %vm450 = vcmp.ge.s32.totalorder %v430, 2
        %v451 = vrot.slane %v412, 6
        %v452 = vsel %vm450, 1, 0
        %vm453 = vcmp.eq.s32.totalorder %v452, 1
        %v454 = vsel %vm453, %v451, 0.0
        %v455 = vlaneseq
        %v456 = vshrl.u32 %v455, 7
        %v457 = vsub.s32 0, %v456
        %v458 = vrot.slane %v449, %v457
        %v459 = vmul.f32 %v454, %v458
        %v460 = vadd.f32 %v448, %v459
        %v461 = vld [vmem:[%s2 + $0x2] sm:$0x1]
        %vm462 = vcmp.ge.s32.totalorder %v430, 1
        %v463 = vrot.slane %v412, 7
        %v464 = vsel %vm462, 1, 0
        %vm465 = vcmp.eq.s32.totalorder %v464, 1
        %v466 = vsel %vm465, %v463, 0.0
        %v467 = vlaneseq
        %v468 = vshrl.u32 %v467, 7
        %v469 = vsub.s32 0, %v468
        %v470 = vrot.slane %v461, %v469
        %v471 = vmul.f32 %v466, %v470
        %v472 = vadd.f32 %v460, %v471
        %v473 = vld [vmem:[%s3] sm:$0x1]
        %v475 = vlaneseq
        %v476 = vshrl.u32 %v475, 7
        %v477 = vsub.s32 0, %v476
        %v478 = vrot.slane %v473, %v477
        %v480 = vadd.f32 %v472, %v478
        %v481 = vxor.u32 %v480, 2147483648
        %v482 = vmul.f32 %v481, 1.442695
        %v483 = vpow.pop %v482
        %v484 = vadd.f32 %v483, 1.0
        %v485 = vrcp.pop %v484
        %v486 = vmul.f32 1.0, %v485
        %v487 = vmul.f32 %v480, %v486
        %v488 = vpack.c.bf16 %v487, %v487
        %v489 = vld [vmem:[%s4] sm:$0xf]
        %v490 = vld [vmem:[%s4 + $0x4] sm:$0xf]
        %v491 = vld [vmem:[%s4 + $0x8] sm:$0xf]
        %v492 = vld [vmem:[%s4 + $0xc] sm:$0xf]
        %v493 = vld [vmem:[%s4 + $0x10] sm:$0xf]
        %v494 = vld [vmem:[%s4 + $0x14] sm:$0xf]
        %v495 = vld [vmem:[%s4 + $0x18] sm:$0xf]
        %v496 = vld [vmem:[%s4 + $0x1c] sm:$0xf]
        %v505 = vunpack.c.l.b16 %v489
        %v506 = vunpack.c.l.b16 %v490
        %v507 = vunpack.c.l.b16 %v491
        %v508 = vunpack.c.l.b16 %v492
        %v509 = vunpack.c.l.b16 %v493
        %v510 = vunpack.c.l.b16 %v494
        %v511 = vunpack.c.l.b16 %v495
        %v512 = vunpack.c.l.b16 %v496
        %v513 = vpack.c.b16 %v506, %v505
        %v514 = vpack.c.b16 %v508, %v507
        %v515 = vpack.c.b16 %v510, %v509
        %v516 = vpack.c.b16 %v512, %v511
        %vm521 = vcmask 523264
        %v523 = vsel %vm521, %v488, 0
        %525 = vmatprep.subr.bf16.mxu0 0
        %526 = vmatpush1.bf16.msra.mxu0 0
        %527 = vmatprep.subr.bf16.mxu0 0
        %528 = vmatpush1.bf16.msra.mxu0 0
        %529 = vmatprep.subr.bf16.mxu0 0
        %530 = vmatpush1.bf16.msra.mxu0 0
        %531 = vmatprep.subr.bf16.mxu0 0
        %532 = vmatpush1.bf16.msra.mxu0 0
        %533 = vmatprep.subr.bf16.mxu0 0
        %534 = vmatpush1.bf16.msra.mxu0 %v516
        %535 = vmatprep.subr.bf16.mxu0 0
        %536 = vmatpush1.bf16.msra.mxu0 %v515
        %537 = vmatprep.subr.bf16.mxu0 0
        %538 = vmatpush1.bf16.msra.mxu0 %v514
        %539 = vmatprep.subr.bf16.mxu0 0
        %540 = vmatpush1.bf16.msra.mxu0 %v513
        %541 = vmatprep.subr.bf16.mxu0 0
        %542 = vmatpush2.bf16.msra.mxu0 0
        %543 = vmatprep.subr.bf16.mxu0 0
        %544 = vmatpush2.bf16.msra.mxu0 0
        %545 = vmatprep.subr.bf16.mxu0 0
        %546 = vmatpush2.bf16.msra.mxu0 0
        %547 = vmatprep.subr.bf16.mxu0 0
        %548 = vmatpush2.bf16.msra.mxu0 0
        %549 = vmatprep.subr.bf16.mxu0 0
        %550 = vmatpush2.bf16.msra.mxu0 0
        %551 = vmatprep.subr.bf16.mxu0 0
        %552 = vmatpush2.bf16.msra.mxu0 0
        %553 = vmatprep.subr.bf16.mxu0 0
        %554 = vmatpush2.bf16.msra.mxu0 0
        %555 = vmatprep.subr.bf16.mxu0 0
        %556 = vmatpush2.bf16.msra.mxu0 0
        %557 = vmatprep.mubr.bf16.mxu0 0
        %558 = vmatmul.mubr.bf16.gmra.mxu0 %v523
        %v559 = vpop.f32.mrf.mxu0
        %v560 = vadd.f32 0.0, %v559
        %v561 = vpop.f32.mrf.mxu0
        %v562 = vpop.f32.mrf.mxu0
        %v563 = vpop.f32.mrf.mxu0
        %564 = vdwg.mxu0
        %v565 = vpack.c.bf16 %v560, %v560
        %v566 = vld [vmem:[%s5] sm:$0x1]
        %v567 = vld [vmem:[%s6] sm:$0x1]
        %v569 = vlaneseq
        %v570 = vshrl.u32 %v569, 7
        %v571 = vsub.s32 0, %v570
        %v572 = vrot.slane %v567, %v571
        %vm574 = vcmask 15360
        %v576 = vsel %vm574, %v565, 0
        %vm578 = vcmask 1040384
        %v580 = vsel %vm578, %v566, 0
        %582 = vmatprep.subr.bf16.mxu0 0
        %583 = vmatpush1.bf16.msra.mxu0 0
        %584 = vmatprep.subr.bf16.mxu0 0
        %585 = vmatpush1.bf16.msra.mxu0 0
        %586 = vmatprep.subr.bf16.mxu0 0
        %587 = vmatpush1.bf16.msra.mxu0 0
        %588 = vmatprep.subr.bf16.mxu0 0
        %589 = vmatpush1.bf16.msra.mxu0 0
        %590 = vmatprep.subr.bf16.mxu0 0
        %591 = vmatpush1.bf16.msra.mxu0 0
        %592 = vmatprep.subr.bf16.mxu0 0
        %593 = vmatpush1.bf16.msra.mxu0 0
        %594 = vmatprep.subr.bf16.mxu0 0
        %595 = vmatpush1.bf16.msra.mxu0 0
        %596 = vmatprep.subr.bf16.mxu0 0
        %597 = vmatpush1.bf16.msra.mxu0 %v580
        %598 = vmatprep.subr.bf16.mxu0 0
        %599 = vmatpush2.bf16.msra.mxu0 0
        %600 = vmatprep.subr.bf16.mxu0 0
        %601 = vmatpush2.bf16.msra.mxu0 0
        %602 = vmatprep.subr.bf16.mxu0 0
        %603 = vmatpush2.bf16.msra.mxu0 0
        %604 = vmatprep.subr.bf16.mxu0 0
        %605 = vmatpush2.bf16.msra.mxu0 0
        %606 = vmatprep.subr.bf16.mxu0 0
        %607 = vmatpush2.bf16.msra.mxu0 0
        %608 = vmatprep.subr.bf16.mxu0 0
        %609 = vmatpush2.bf16.msra.mxu0 0
        %610 = vmatprep.subr.bf16.mxu0 0
        %611 = vmatpush2.bf16.msra.mxu0 0
        %612 = vmatprep.subr.bf16.mxu0 0
        %613 = vmatpush2.bf16.msra.mxu0 0
        %614 = vmatprep.mubr.bf16.mxu0 0
        %615 = vmatmul.mubr.bf16.gmra.mxu0 %v576
        %v616 = vpop.f32.mrf.mxu0
        %v617 = vadd.f32 %v572, %v616
        %v618 = vpop.f32.mrf.mxu0
        %v619 = vpop.f32.mrf.mxu0
        %v620 = vpop.f32.mrf.mxu0
        %621 = vdwg.mxu0
        %vm622 = vcmp.gt.f32.partialorder %v617, 20.0
        %v623 = vmul.f32 %v617, 1.442695
        %v624 = vpow.pop %v623
        %v625 = vadd.f32 %v624, 1.0
        %v626 = vlog2.pop %v625
        %v627 = vmul.f32 %v626, 0.6931472
        %v628 = vsel %vm622, %v617, %v627
        %629 = vst.msk [vmem:[#allocation2] sm:$0xff] %vm521, %v628
        %v630 = vmul.f32 %v628, %v487
        %631 = vst.msk [vmem:[#allocation3] sm:$0xff] %vm521, %v630
        %633 = vrot.lane.b32.xlu0 %v560, 126
        %v634 = vpop.permute.xlu0 %633
        %vm636 = vcmask 130048
        %637 = vst.msk [vmem:[#allocation4] sm:$0xff] %vm636, %v634
        %638 = vrot.lane.b32.xlu0 %v560, 110
        %v639 = vpop.permute.xlu0 %638
        %641 = vst.msk [vmem:[#allocation5] sm:$0xff] %vm636, %v639
        %v642 = vld [vmem:[%s7] sm:$0xff]
        %v643 = vld [vmem:[%s7 + $0x8] sm:$0xff]
        %v644 = vpack.c.bf16 %v643, %v642
        %v645 = vld [vmem:[#allocation2] sm:$0xff]
        %v646 = vld [vmem:[#allocation3] sm:$0xff]
        %v647 = vld [vmem:[#allocation4] sm:$0xff]
        %v648 = vld [vmem:[#allocation5] sm:$0xff]
        %v649 = vpack.c.bf16 %v645, %v645
        %v651 = vpack.i.b16 %v649, %v649
        %v653 = vlaneseq
        %v654 = vshrl.u32 %v653, 7
        %v655 = vsub.s32 0, %v654
        %v656 = vrot.slane %v651, %v655
        %v657 = vmul.bf16 %v644, %v656
        %v659 = vmul.bf16 %v657, 1069105081
        %v660 = vpow.bf16.pop %v659
        %v661 = vshrl.u32 %v649, 16
        %v662 = vpack.i.b16 %v661, %v661
        %v664 = vlaneseq
        %v665 = vshrl.u32 %v664, 7
        %v666 = vsub.s32 0, %v665
        %v667 = vrot.slane %v662, %v666
        %v668 = vmul.bf16 %v644, %v667
        %v670 = vmul.bf16 %v668, 1069105081
        %v671 = vpow.bf16.pop %v670
        %v672 = vlaneseq
        %v673 = vshrl.u32 %v672, 7
        %v674 = vsub.s32 1, %v673
        %v675 = vrot.slane %v651, %v674
        %v676 = vmul.bf16 %v644, %v675
        %v678 = vmul.bf16 %v676, 1069105081
        %v679 = vpow.bf16.pop %v678
        %v680 = vlaneseq
        %v681 = vshrl.u32 %v680, 7
        %v682 = vsub.s32 1, %v681
        %v683 = vrot.slane %v662, %v682
        %v684 = vmul.bf16 %v644, %v683
        %v686 = vmul.bf16 %v684, 1069105081
        %v687 = vpow.bf16.pop %v686
        %v688 = vlaneseq
        %v689 = vshrl.u32 %v688, 7
        %v690 = vsub.s32 2, %v689
        %v691 = vrot.slane %v651, %v690
        %v692 = vmul.bf16 %v644, %v691
        %v694 = vmul.bf16 %v692, 1069105081
        %v695 = vpow.bf16.pop %v694
        %v696 = vlaneseq
        %v697 = vshrl.u32 %v696, 7
        %v698 = vsub.s32 2, %v697
        %v699 = vrot.slane %v662, %v698
        %v700 = vmul.bf16 %v644, %v699
        %v702 = vmul.bf16 %v700, 1069105081
        %v703 = vpow.bf16.pop %v702
        %v704 = vlaneseq
        %v705 = vshrl.u32 %v704, 7
        %v706 = vsub.s32 3, %v705
        %v707 = vrot.slane %v651, %v706
        %v708 = vmul.bf16 %v644, %v707
        %v710 = vmul.bf16 %v708, 1069105081
        %v711 = vpow.bf16.pop %v710
        %v712 = vlaneseq
        %v713 = vshrl.u32 %v712, 7
        %v714 = vsub.s32 3, %v713
        %v715 = vrot.slane %v662, %v714
        %v716 = vmul.bf16 %v644, %v715
        %v718 = vmul.bf16 %v716, 1069105081
        %v719 = vpow.bf16.pop %v718
        %720 = vxpose.xlu0.b32.start [1/16] %v647, 128
        %721 = vxpose.xlu0.b32.cont [2/16] 0.0, 128
        %722 = vxpose.xlu0.b32.cont [3/16] 0.0, 128
        %723 = vxpose.xlu0.b32.cont [4/16] 0.0, 128
        %724 = vxpose.xlu0.b32.cont [5/16] 0.0, 128
        %725 = vxpose.xlu0.b32.cont [6/16] 0.0, 128
        %726 = vxpose.xlu0.b32.cont [7/16] 0.0, 128
        %727 = vxpose.xlu0.b32.cont [8/16] 0.0, 128
        %728 = vxpose.xlu0.b32.cont [9/16] 0.0, 128
        %729 = vxpose.xlu0.b32.cont [10/16] 0.0, 128
        %730 = vxpose.xlu0.b32.cont [11/16] 0.0, 128
        %731 = vxpose.xlu0.b32.cont [12/16] 0.0, 128
        %732 = vxpose.xlu0.b32.cont [13/16] 0.0, 128
        %733 = vxpose.xlu0.b32.cont [14/16] 0.0, 128
        %734 = vxpose.xlu0.b32.cont [15/16] 0.0, 128
        %735 = vxpose.xlu0.b32.end [16/16] 0.0, 128
        %v736 = vpop.trf.xlu0
        %v737 = vpop.trf.xlu0
        %v738 = vpop.trf.xlu0
        %v739 = vpop.trf.xlu0
        %v740 = vpop.trf.xlu0
        %v741 = vpop.trf.xlu0
        %v742 = vpop.trf.xlu0
        %v743 = vpop.trf.xlu0
        %v744 = vpop.trf.xlu0
        %v745 = vpop.trf.xlu0
        %v746 = vpop.trf.xlu0
        %v747 = vpop.trf.xlu0
        %v748 = vpop.trf.xlu0
        %v749 = vpop.trf.xlu0
        %v750 = vpop.trf.xlu0
        %v751 = vpop.trf.xlu0
        %vm752 = vcmask 7168
        %v754 = vsel %vm752, %v736, 0
        %v757 = vsel %vm752, %v737, 0
        %v760 = vsel %vm578, %v646, 0
        %762 = vmatprep.subr.mxu0 0.0
        %763 = vmatpush1.msra.mxu0 0.0
        %764 = vmatprep.subr.mxu0 0.0
        %765 = vmatpush1.msra.mxu0 0.0
        %766 = vmatprep.subr.mxu0 0.0
        %767 = vmatpush1.msra.mxu0 0.0
        %768 = vmatprep.subr.mxu0 0.0
        %769 = vmatpush1.msra.mxu0 0.0
        %770 = vmatprep.subr.mxu0 0.0
        %771 = vmatpush1.msra.mxu0 0.0
        %772 = vmatprep.subr.mxu0 0.0
        %773 = vmatpush1.msra.mxu0 0.0
        %774 = vmatprep.subr.mxu0 0.0
        %775 = vmatpush1.msra.mxu0 0.0
        %776 = vmatprep.subr.mxu0 0.0
        %777 = vmatpush1.msra.mxu0 0.0
        %778 = vmatprep.subr.mxu0 0.0
        %779 = vmatpush1.msra.mxu0 0.0
        %780 = vmatprep.subr.mxu0 0.0
        %781 = vmatpush1.msra.mxu0 0.0
        %782 = vmatprep.subr.mxu0 0.0
        %783 = vmatpush1.msra.mxu0 0.0
        %784 = vmatprep.subr.mxu0 0.0
        %785 = vmatpush1.msra.mxu0 0.0
        %786 = vmatprep.subr.mxu0 0.0
        %787 = vmatpush1.msra.mxu0 0.0
        %788 = vmatprep.subr.mxu0 0.0
        %789 = vmatpush1.msra.mxu0 0.0
        %790 = vmatprep.subr.mxu0 0.0
        %791 = vmatpush1.msra.mxu0 0.0
        %792 = vmatprep.subr.mxu0 0.0
        %793 = vmatpush1.msra.mxu0 %v760
        %794 = vmatprep.subr.mxu0 0.0
        %795 = vmatpush2.msra.mxu0 0.0
        %796 = vmatprep.subr.mxu0 0.0
        %797 = vmatpush2.msra.mxu0 0.0
        %798 = vmatprep.subr.mxu0 0.0
        %799 = vmatpush2.msra.mxu0 0.0
        %800 = vmatprep.subr.mxu0 0.0
        %801 = vmatpush2.msra.mxu0 0.0
        %802 = vmatprep.subr.mxu0 0.0
        %803 = vmatpush2.msra.mxu0 0.0
        %804 = vmatprep.subr.mxu0 0.0
        %805 = vmatpush2.msra.mxu0 0.0
        %806 = vmatprep.subr.mxu0 0.0
        %807 = vmatpush2.msra.mxu0 0.0
        %808 = vmatprep.subr.mxu0 0.0
        %809 = vmatpush2.msra.mxu0 0.0
        %810 = vmatprep.subr.mxu0 0.0
        %811 = vmatpush2.msra.mxu0 0.0
        %812 = vmatprep.subr.mxu0 0.0
        %813 = vmatpush2.msra.mxu0 0.0
        %814 = vmatprep.subr.mxu0 0.0
        %815 = vmatpush2.msra.mxu0 0.0
        %816 = vmatprep.subr.mxu0 0.0
        %817 = vmatpush2.msra.mxu0 0.0
        %818 = vmatprep.subr.mxu0 0.0
        %819 = vmatpush2.msra.mxu0 0.0
        %820 = vmatprep.subr.mxu0 0.0
        %821 = vmatpush2.msra.mxu0 0.0
        %822 = vmatprep.subr.mxu0 0.0
        %823 = vmatpush2.msra.mxu0 0.0
        %824 = vmatprep.subr.mxu0 0.0
        %825 = vmatpush2.msra.mxu0 0.0
        %826 = vmatprep.mubr.f32.mxu0 0.0
        %827 = vmatmul.mubr.f32.gmra.mxu0 %v754
        %v828 = vpop.f32.mrf.mxu0
        %v829 = vadd.f32 0.0, %v828
        %v830 = vpop.f32.mrf.mxu0
        %831 = vmatprep.mubr.f32.mxu0 0.0
        %832 = vmatmul.mubr.f32.gmra.mxu0 %v757
        %v833 = vpop.f32.mrf.mxu0
        %v834 = vadd.f32 0.0, %v833
        %v835 = vpop.f32.mrf.mxu0
        %836 = vdwg.mxu0
        %v838 = vrot.slane %v647, 1
        %840 = vxpose.xlu0.b32.start [1/16] %v838, 128
        %841 = vxpose.xlu0.b32.cont [2/16] 0.0, 128
        %842 = vxpose.xlu0.b32.cont [3/16] 0.0, 128
        %843 = vxpose.xlu0.b32.cont [4/16] 0.0, 128
        %844 = vxpose.xlu0.b32.cont [5/16] 0.0, 128
        %845 = vxpose.xlu0.b32.cont [6/16] 0.0, 128
        %846 = vxpose.xlu0.b32.cont [7/16] 0.0, 128
        %847 = vxpose.xlu0.b32.cont [8/16] 0.0, 128
        %848 = vxpose.xlu0.b32.cont [9/16] 0.0, 128
        %849 = vxpose.xlu0.b32.cont [10/16] 0.0, 128
        %850 = vxpose.xlu0.b32.cont [11/16] 0.0, 128
        %851 = vxpose.xlu0.b32.cont [12/16] 0.0, 128
        %852 = vxpose.xlu0.b32.cont [13/16] 0.0, 128
        %853 = vxpose.xlu0.b32.cont [14/16] 0.0, 128
        %854 = vxpose.xlu0.b32.cont [15/16] 0.0, 128
        %855 = vxpose.xlu0.b32.end [16/16] 0.0, 128
        %v856 = vpop.trf.xlu0
        %v857 = vpop.trf.xlu0
        %v858 = vpop.trf.xlu0
        %v859 = vpop.trf.xlu0
        %v860 = vpop.trf.xlu0
        %v861 = vpop.trf.xlu0
        %v862 = vpop.trf.xlu0
        %v863 = vpop.trf.xlu0
        %v864 = vpop.trf.xlu0
        %v865 = vpop.trf.xlu0
        %v866 = vpop.trf.xlu0
        %v867 = vpop.trf.xlu0
        %v868 = vpop.trf.xlu0
        %v869 = vpop.trf.xlu0
        %v870 = vpop.trf.xlu0
        %v871 = vpop.trf.xlu0
        %v872 = vrot.slane %v646, 1
        %v874 = vsel %vm752, %v856, 0
        %v877 = vsel %vm752, %v857, 0
        %v879 = vsel %vm578, %v872, 0
        %881 = vmatprep.subr.mxu0 0.0
        %882 = vmatpush1.msra.mxu0 0.0
        %883 = vmatprep.subr.mxu0 0.0
        %884 = vmatpush1.msra.mxu0 0.0
        %885 = vmatprep.subr.mxu0 0.0
        %886 = vmatpush1.msra.mxu0 0.0
        %887 = vmatprep.subr.mxu0 0.0
        %888 = vmatpush1.msra.mxu0 0.0
        %889 = vmatprep.subr.mxu0 0.0
        %890 = vmatpush1.msra.mxu0 0.0
        %891 = vmatprep.subr.mxu0 0.0
        %892 = vmatpush1.msra.mxu0 0.0
        %893 = vmatprep.subr.mxu0 0.0
        %894 = vmatpush1.msra.mxu0 0.0
        %895 = vmatprep.subr.mxu0 0.0
        %896 = vmatpush1.msra.mxu0 0.0
        %897 = vmatprep.subr.mxu0 0.0
        %898 = vmatpush1.msra.mxu0 0.0
        %899 = vmatprep.subr.mxu0 0.0
        %900 = vmatpush1.msra.mxu0 0.0
        %901 = vmatprep.subr.mxu0 0.0
        %902 = vmatpush1.msra.mxu0 0.0
        %903 = vmatprep.subr.mxu0 0.0
        %904 = vmatpush1.msra.mxu0 0.0
        %905 = vmatprep.subr.mxu0 0.0
        %906 = vmatpush1.msra.mxu0 0.0
        %907 = vmatprep.subr.mxu0 0.0
        %908 = vmatpush1.msra.mxu0 0.0
        %909 = vmatprep.subr.mxu0 0.0
        %910 = vmatpush1.msra.mxu0 0.0
        %911 = vmatprep.subr.mxu0 0.0
        %912 = vmatpush1.msra.mxu0 %v879
        %913 = vmatprep.subr.mxu0 0.0
        %914 = vmatpush2.msra.mxu0 0.0
        %915 = vmatprep.subr.mxu0 0.0
        %916 = vmatpush2.msra.mxu0 0.0
        %917 = vmatprep.subr.mxu0 0.0
        %918 = vmatpush2.msra.mxu0 0.0
        %919 = vmatprep.subr.mxu0 0.0
        %920 = vmatpush2.msra.mxu0 0.0
        %921 = vmatprep.subr.mxu0 0.0
        %922 = vmatpush2.msra.mxu0 0.0
        %923 = vmatprep.subr.mxu0 0.0
        %924 = vmatpush2.msra.mxu0 0.0
        %925 = vmatprep.subr.mxu0 0.0
        %926 = vmatpush2.msra.mxu0 0.0
        %927 = vmatprep.subr.mxu0 0.0
        %928 = vmatpush2.msra.mxu0 0.0
        %929 = vmatprep.subr.mxu0 0.0
        %930 = vmatpush2.msra.mxu0 0.0
        %931 = vmatprep.subr.mxu0 0.0
        %932 = vmatpush2.msra.mxu0 0.0
        %933 = vmatprep.subr.mxu0 0.0
        %934 = vmatpush2.msra.mxu0 0.0
        %935 = vmatprep.subr.mxu0 0.0
        %936 = vmatpush2.msra.mxu0 0.0
        %937 = vmatprep.subr.mxu0 0.0
        %938 = vmatpush2.msra.mxu0 0.0
        %939 = vmatprep.subr.mxu0 0.0
        %940 = vmatpush2.msra.mxu0 0.0
        %941 = vmatprep.subr.mxu0 0.0
        %942 = vmatpush2.msra.mxu0 0.0
        %943 = vmatprep.subr.mxu0 0.0
        %944 = vmatpush2.msra.mxu0 0.0
        %945 = vmatprep.mubr.f32.mxu0 0.0
        %946 = vmatmul.mubr.f32.gmra.mxu0 %v874
        %v947 = vpop.f32.mrf.mxu0
        %v948 = vadd.f32 0.0, %v947
        %v949 = vpop.f32.mrf.mxu0
        %950 = vmatprep.mubr.f32.mxu0 0.0
        %951 = vmatmul.mubr.f32.gmra.mxu0 %v877
        %v952 = vpop.f32.mrf.mxu0
        %v953 = vadd.f32 0.0, %v952
        %v954 = vpop.f32.mrf.mxu0
        %955 = vdwg.mxu0
        %v956 = vrot.slane %v647, 2
        %958 = vxpose.xlu0.b32.start [1/16] %v956, 128
        %959 = vxpose.xlu0.b32.cont [2/16] 0.0, 128
        %960 = vxpose.xlu0.b32.cont [3/16] 0.0, 128
        %961 = vxpose.xlu0.b32.cont [4/16] 0.0, 128
        %962 = vxpose.xlu0.b32.cont [5/16] 0.0, 128
        %963 = vxpose.xlu0.b32.cont [6/16] 0.0, 128
        %964 = vxpose.xlu0.b32.cont [7/16] 0.0, 128
        %965 = vxpose.xlu0.b32.cont [8/16] 0.0, 128
        %966 = vxpose.xlu0.b32.cont [9/16] 0.0, 128
        %967 = vxpose.xlu0.b32.cont [10/16] 0.0, 128
        %968 = vxpose.xlu0.b32.cont [11/16] 0.0, 128
        %969 = vxpose.xlu0.b32.cont [12/16] 0.0, 128
        %970 = vxpose.xlu0.b32.cont [13/16] 0.0, 128
        %971 = vxpose.xlu0.b32.cont [14/16] 0.0, 128
        %972 = vxpose.xlu0.b32.cont [15/16] 0.0, 128
        %973 = vxpose.xlu0.b32.end [16/16] 0.0, 128
        %v974 = vpop.trf.xlu0
        %v975 = vpop.trf.xlu0
        %v976 = vpop.trf.xlu0
        %v977 = vpop.trf.xlu0
        %v978 = vpop.trf.xlu0
        %v979 = vpop.trf.xlu0
        %v980 = vpop.trf.xlu0
        %v981 = vpop.trf.xlu0
        %v982 = vpop.trf.xlu0
        %v983 = vpop.trf.xlu0
        %v984 = vpop.trf.xlu0
        %v985 = vpop.trf.xlu0
        %v986 = vpop.trf.xlu0
        %v987 = vpop.trf.xlu0
        %v988 = vpop.trf.xlu0
        %v989 = vpop.trf.xlu0
        %v990 = vrot.slane %v646, 2
        %v992 = vsel %vm752, %v974, 0
        %v995 = vsel %vm752, %v975, 0
        %v997 = vsel %vm578, %v990, 0
        %999 = vmatprep.subr.mxu0 0.0
        %1000 = vmatpush1.msra.mxu0 0.0
        %1001 = vmatprep.subr.mxu0 0.0
        %1002 = vmatpush1.msra.mxu0 0.0
        %1003 = vmatprep.subr.mxu0 0.0
        %1004 = vmatpush1.msra.mxu0 0.0
        %1005 = vmatprep.subr.mxu0 0.0
        %1006 = vmatpush1.msra.mxu0 0.0
        %1007 = vmatprep.subr.mxu0 0.0
        %1008 = vmatpush1.msra.mxu0 0.0
        %1009 = vmatprep.subr.mxu0 0.0
        %1010 = vmatpush1.msra.mxu0 0.0
        %1011 = vmatprep.subr.mxu0 0.0
        %1012 = vmatpush1.msra.mxu0 0.0
        %1013 = vmatprep.subr.mxu0 0.0
        %1014 = vmatpush1.msra.mxu0 0.0
        %1015 = vmatprep.subr.mxu0 0.0
        %1016 = vmatpush1.msra.mxu0 0.0
        %1017 = vmatprep.subr.mxu0 0.0
        %1018 = vmatpush1.msra.mxu0 0.0
        %1019 = vmatprep.subr.mxu0 0.0
        %1020 = vmatpush1.msra.mxu0 0.0
        %1021 = vmatprep.subr.mxu0 0.0
        %1022 = vmatpush1.msra.mxu0 0.0
        %1023 = vmatprep.subr.mxu0 0.0
        %1024 = vmatpush1.msra.mxu0 0.0
        %1025 = vmatprep.subr.mxu0 0.0
        %1026 = vmatpush1.msra.mxu0 0.0
        %1027 = vmatprep.subr.mxu0 0.0
        %1028 = vmatpush1.msra.mxu0 0.0
        %1029 = vmatprep.subr.mxu0 0.0
        %1030 = vmatpush1.msra.mxu0 %v997
        %1031 = vmatprep.subr.mxu0 0.0
        %1032 = vmatpush2.msra.mxu0 0.0
        %1033 = vmatprep.subr.mxu0 0.0
        %1034 = vmatpush2.msra.mxu0 0.0
        %1035 = vmatprep.subr.mxu0 0.0
        %1036 = vmatpush2.msra.mxu0 0.0
        %1037 = vmatprep.subr.mxu0 0.0
        %1038 = vmatpush2.msra.mxu0 0.0
        %1039 = vmatprep.subr.mxu0 0.0
        %1040 = vmatpush2.msra.mxu0 0.0
        %1041 = vmatprep.subr.mxu0 0.0
        %1042 = vmatpush2.msra.mxu0 0.0
        %1043 = vmatprep.subr.mxu0 0.0
        %1044 = vmatpush2.msra.mxu0 0.0
        %1045 = vmatprep.subr.mxu0 0.0
        %1046 = vmatpush2.msra.mxu0 0.0
        %1047 = vmatprep.subr.mxu0 0.0
        %1048 = vmatpush2.msra.mxu0 0.0
        %1049 = vmatprep.subr.mxu0 0.0
        %1050 = vmatpush2.msra.mxu0 0.0
        %1051 = vmatprep.subr.mxu0 0.0
        %1052 = vmatpush2.msra.mxu0 0.0
        %1053 = vmatprep.subr.mxu0 0.0
        %1054 = vmatpush2.msra.mxu0 0.0
        %1055 = vmatprep.subr.mxu0 0.0
        %1056 = vmatpush2.msra.mxu0 0.0
        %1057 = vmatprep.subr.mxu0 0.0
        %1058 = vmatpush2.msra.mxu0 0.0
        %1059 = vmatprep.subr.mxu0 0.0
        %1060 = vmatpush2.msra.mxu0 0.0
        %1061 = vmatprep.subr.mxu0 0.0
        %1062 = vmatpush2.msra.mxu0 0.0
        %1063 = vmatprep.mubr.f32.mxu0 0.0
        %1064 = vmatmul.mubr.f32.gmra.mxu0 %v992
        %v1065 = vpop.f32.mrf.mxu0
        %v1066 = vadd.f32 0.0, %v1065
        %v1067 = vpop.f32.mrf.mxu0
        %1068 = vmatprep.mubr.f32.mxu0 0.0
        %1069 = vmatmul.mubr.f32.gmra.mxu0 %v995
        %v1070 = vpop.f32.mrf.mxu0
        %v1071 = vadd.f32 0.0, %v1070
        %v1072 = vpop.f32.mrf.mxu0
        %1073 = vdwg.mxu0
        %v1074 = vrot.slane %v647, 3
        %1076 = vxpose.xlu0.b32.start [1/16] %v1074, 128
        %1077 = vxpose.xlu0.b32.cont [2/16] 0.0, 128
        %1078 = vxpose.xlu0.b32.cont [3/16] 0.0, 128
        %1079 = vxpose.xlu0.b32.cont [4/16] 0.0, 128
        %1080 = vxpose.xlu0.b32.cont [5/16] 0.0, 128
        %1081 = vxpose.xlu0.b32.cont [6/16] 0.0, 128
        %1082 = vxpose.xlu0.b32.cont [7/16] 0.0, 128
        %1083 = vxpose.xlu0.b32.cont [8/16] 0.0, 128
        %1084 = vxpose.xlu0.b32.cont [9/16] 0.0, 128
        %1085 = vxpose.xlu0.b32.cont [10/16] 0.0, 128
        %1086 = vxpose.xlu0.b32.cont [11/16] 0.0, 128
        %1087 = vxpose.xlu0.b32.cont [12/16] 0.0, 128
        %1088 = vxpose.xlu0.b32.cont [13/16] 0.0, 128
        %1089 = vxpose.xlu0.b32.cont [14/16] 0.0, 128
        %1090 = vxpose.xlu0.b32.cont [15/16] 0.0, 128
        %1091 = vxpose.xlu0.b32.end [16/16] 0.0, 128
        %v1092 = vpop.trf.xlu0
        %v1093 = vpop.trf.xlu0
        %v1094 = vpop.trf.xlu0
        %v1095 = vpop.trf.xlu0
        %v1096 = vpop.trf.xlu0
        %v1097 = vpop.trf.xlu0
        %v1098 = vpop.trf.xlu0
        %v1099 = vpop.trf.xlu0
        %v1100 = vpop.trf.xlu0
        %v1101 = vpop.trf.xlu0
        %v1102 = vpop.trf.xlu0
        %v1103 = vpop.trf.xlu0
        %v1104 = vpop.trf.xlu0
        %v1105 = vpop.trf.xlu0
        %v1106 = vpop.trf.xlu0
        %v1107 = vpop.trf.xlu0
        %v1108 = vrot.slane %v646, 3
        %v1110 = vsel %vm752, %v1092, 0
        %v1113 = vsel %vm752, %v1093, 0
        %v1115 = vsel %vm578, %v1108, 0
        %1117 = vmatprep.subr.mxu0 0.0
        %1118 = vmatpush1.msra.mxu0 0.0
        %1119 = vmatprep.subr.mxu0 0.0
        %1120 = vmatpush1.msra.mxu0 0.0
        %1121 = vmatprep.subr.mxu0 0.0
        %1122 = vmatpush1.msra.mxu0 0.0
        %1123 = vmatprep.subr.mxu0 0.0
        %1124 = vmatpush1.msra.mxu0 0.0
        %1125 = vmatprep.subr.mxu0 0.0
        %1126 = vmatpush1.msra.mxu0 0.0
        %1127 = vmatprep.subr.mxu0 0.0
        %1128 = vmatpush1.msra.mxu0 0.0
        %1129 = vmatprep.subr.mxu0 0.0
        %1130 = vmatpush1.msra.mxu0 0.0
        %1131 = vmatprep.subr.mxu0 0.0
        %1132 = vmatpush1.msra.mxu0 0.0
        %1133 = vmatprep.subr.mxu0 0.0
        %1134 = vmatpush1.msra.mxu0 0.0
        %1135 = vmatprep.subr.mxu0 0.0
        %1136 = vmatpush1.msra.mxu0 0.0
        %1137 = vmatprep.subr.mxu0 0.0
        %1138 = vmatpush1.msra.mxu0 0.0
        %1139 = vmatprep.subr.mxu0 0.0
        %1140 = vmatpush1.msra.mxu0 0.0
        %1141 = vmatprep.subr.mxu0 0.0
        %1142 = vmatpush1.msra.mxu0 0.0
        %1143 = vmatprep.subr.mxu0 0.0
        %1144 = vmatpush1.msra.mxu0 0.0
        %1145 = vmatprep.subr.mxu0 0.0
        %1146 = vmatpush1.msra.mxu0 0.0
        %1147 = vmatprep.subr.mxu0 0.0
        %1148 = vmatpush1.msra.mxu0 %v1115
        %1149 = vmatprep.subr.mxu0 0.0
        %1150 = vmatpush2.msra.mxu0 0.0
        %1151 = vmatprep.subr.mxu0 0.0
        %1152 = vmatpush2.msra.mxu0 0.0
        %1153 = vmatprep.subr.mxu0 0.0
        %1154 = vmatpush2.msra.mxu0 0.0
        %1155 = vmatprep.subr.mxu0 0.0
        %1156 = vmatpush2.msra.mxu0 0.0
        %1157 = vmatprep.subr.mxu0 0.0
        %1158 = vmatpush2.msra.mxu0 0.0
        %1159 = vmatprep.subr.mxu0 0.0
        %1160 = vmatpush2.msra.mxu0 0.0
        %1161 = vmatprep.subr.mxu0 0.0
        %1162 = vmatpush2.msra.mxu0 0.0
        %1163 = vmatprep.subr.mxu0 0.0
        %1164 = vmatpush2.msra.mxu0 0.0
        %1165 = vmatprep.subr.mxu0 0.0
        %1166 = vmatpush2.msra.mxu0 0.0
        %1167 = vmatprep.subr.mxu0 0.0
        %1168 = vmatpush2.msra.mxu0 0.0
        %1169 = vmatprep.subr.mxu0 0.0
        %1170 = vmatpush2.msra.mxu0 0.0
        %1171 = vmatprep.subr.mxu0 0.0
        %1172 = vmatpush2.msra.mxu0 0.0
        %1173 = vmatprep.subr.mxu0 0.0
        %1174 = vmatpush2.msra.mxu0 0.0
        %1175 = vmatprep.subr.mxu0 0.0
        %1176 = vmatpush2.msra.mxu0 0.0
        %1177 = vmatprep.subr.mxu0 0.0
        %1178 = vmatpush2.msra.mxu0 0.0
        %1179 = vmatprep.subr.mxu0 0.0
        %1180 = vmatpush2.msra.mxu0 0.0
        %1181 = vmatprep.mubr.f32.mxu0 0.0
        %1182 = vmatmul.mubr.f32.gmra.mxu0 %v1110
        %v1183 = vpop.f32.mrf.mxu0
        %v1184 = vadd.f32 0.0, %v1183
        %v1185 = vpop.f32.mrf.mxu0
        %1186 = vmatprep.mubr.f32.mxu0 0.0
        %1187 = vmatmul.mubr.f32.gmra.mxu0 %v1113
        %v1188 = vpop.f32.mrf.mxu0
        %v1189 = vadd.f32 0.0, %v1188
        %v1190 = vpop.f32.mrf.mxu0
        %1191 = vdwg.mxu0
        %v1192 = vrot.slane %v647, 4
        %1194 = vxpose.xlu0.b32.start [1/16] %v1192, 128
        %1195 = vxpose.xlu0.b32.cont [2/16] 0.0, 128
        %1196 = vxpose.xlu0.b32.cont [3/16] 0.0, 128
        %1197 = vxpose.xlu0.b32.cont [4/16] 0.0, 128
        %1198 = vxpose.xlu0.b32.cont [5/16] 0.0, 128
        %1199 = vxpose.xlu0.b32.cont [6/16] 0.0, 128
        %1200 = vxpose.xlu0.b32.cont [7/16] 0.0, 128
        %1201 = vxpose.xlu0.b32.cont [8/16] 0.0, 128
        %1202 = vxpose.xlu0.b32.cont [9/16] 0.0, 128
        %1203 = vxpose.xlu0.b32.cont [10/16] 0.0, 128
        %1204 = vxpose.xlu0.b32.cont [11/16] 0.0, 128
        %1205 = vxpose.xlu0.b32.cont [12/16] 0.0, 128
        %1206 = vxpose.xlu0.b32.cont [13/16] 0.0, 128
        %1207 = vxpose.xlu0.b32.cont [14/16] 0.0, 128
        %1208 = vxpose.xlu0.b32.cont [15/16] 0.0, 128
        %1209 = vxpose.xlu0.b32.end [16/16] 0.0, 128
        %v1210 = vpop.trf.xlu0
        %v1211 = vpop.trf.xlu0
        %v1212 = vpop.trf.xlu0
        %v1213 = vpop.trf.xlu0
        %v1214 = vpop.trf.xlu0
        %v1215 = vpop.trf.xlu0
        %v1216 = vpop.trf.xlu0
        %v1217 = vpop.trf.xlu0
        %v1218 = vpop.trf.xlu0
        %v1219 = vpop.trf.xlu0
        %v1220 = vpop.trf.xlu0
        %v1221 = vpop.trf.xlu0
        %v1222 = vpop.trf.xlu0
        %v1223 = vpop.trf.xlu0
        %v1224 = vpop.trf.xlu0
        %v1225 = vpop.trf.xlu0
        %v1226 = vrot.slane %v646, 4
        %v1228 = vsel %vm752, %v1210, 0
        %v1231 = vsel %vm752, %v1211, 0
        %v1233 = vsel %vm578, %v1226, 0
        %1235 = vmatprep.subr.mxu0 0.0
        %1236 = vmatpush1.msra.mxu0 0.0
        %1237 = vmatprep.subr.mxu0 0.0
        %1238 = vmatpush1.msra.mxu0 0.0
        %1239 = vmatprep.subr.mxu0 0.0
        %1240 = vmatpush1.msra.mxu0 0.0
        %1241 = vmatprep.subr.mxu0 0.0
        %1242 = vmatpush1.msra.mxu0 0.0
        %1243 = vmatprep.subr.mxu0 0.0
        %1244 = vmatpush1.msra.mxu0 0.0
        %1245 = vmatprep.subr.mxu0 0.0
        %1246 = vmatpush1.msra.mxu0 0.0
        %1247 = vmatprep.subr.mxu0 0.0
        %1248 = vmatpush1.msra.mxu0 0.0
        %1249 = vmatprep.subr.mxu0 0.0
        %1250 = vmatpush1.msra.mxu0 0.0
        %1251 = vmatprep.subr.mxu0 0.0
        %1252 = vmatpush1.msra.mxu0 0.0
        %1253 = vmatprep.subr.mxu0 0.0
        %1254 = vmatpush1.msra.mxu0 0.0
        %1255 = vmatprep.subr.mxu0 0.0
        %1256 = vmatpush1.msra.mxu0 0.0
        %1257 = vmatprep.subr.mxu0 0.0
        %1258 = vmatpush1.msra.mxu0 0.0
        %1259 = vmatprep.subr.mxu0 0.0
        %1260 = vmatpush1.msra.mxu0 0.0
        %1261 = vmatprep.subr.mxu0 0.0
        %1262 = vmatpush1.msra.mxu0 0.0
        %1263 = vmatprep.subr.mxu0 0.0
        %1264 = vmatpush1.msra.mxu0 0.0
        %1265 = vmatprep.subr.mxu0 0.0
        %1266 = vmatpush1.msra.mxu0 %v1233
        %1267 = vmatprep.subr.mxu0 0.0
        %1268 = vmatpush2.msra.mxu0 0.0
        %1269 = vmatprep.subr.mxu0 0.0
        %1270 = vmatpush2.msra.mxu0 0.0
        %1271 = vmatprep.subr.mxu0 0.0
        %1272 = vmatpush2.msra.mxu0 0.0
        %1273 = vmatprep.subr.mxu0 0.0
        %1274 = vmatpush2.msra.mxu0 0.0
        %1275 = vmatprep.subr.mxu0 0.0
        %1276 = vmatpush2.msra.mxu0 0.0
        %1277 = vmatprep.subr.mxu0 0.0
        %1278 = vmatpush2.msra.mxu0 0.0
        %1279 = vmatprep.subr.mxu0 0.0
        %1280 = vmatpush2.msra.mxu0 0.0
        %1281 = vmatprep.subr.mxu0 0.0
        %1282 = vmatpush2.msra.mxu0 0.0
        %1283 = vmatprep.subr.mxu0 0.0
        %1284 = vmatpush2.msra.mxu0 0.0
        %1285 = vmatprep.subr.mxu0 0.0
        %1286 = vmatpush2.msra.mxu0 0.0
        %1287 = vmatprep.subr.mxu0 0.0
        %1288 = vmatpush2.msra.mxu0 0.0
        %1289 = vmatprep.subr.mxu0 0.0
        %1290 = vmatpush2.msra.mxu0 0.0
        %1291 = vmatprep.subr.mxu0 0.0
        %1292 = vmatpush2.msra.mxu0 0.0
        %1293 = vmatprep.subr.mxu0 0.0
        %1294 = vmatpush2.msra.mxu0 0.0
        %1295 = vmatprep.subr.mxu0 0.0
        %1296 = vmatpush2.msra.mxu0 0.0
        %1297 = vmatprep.subr.mxu0 0.0
        %1298 = vmatpush2.msra.mxu0 0.0
        %1299 = vmatprep.mubr.f32.mxu0 0.0
        %1300 = vmatmul.mubr.f32.gmra.mxu0 %v1228
        %v1301 = vpop.f32.mrf.mxu0
        %v1302 = vadd.f32 0.0, %v1301
        %v1303 = vpop.f32.mrf.mxu0
        %1304 = vmatprep.mubr.f32.mxu0 0.0
        %1305 = vmatmul.mubr.f32.gmra.mxu0 %v1231
        %v1306 = vpop.f32.mrf.mxu0
        %v1307 = vadd.f32 0.0, %v1306
        %v1308 = vpop.f32.mrf.mxu0
        %1309 = vdwg.mxu0
        %v1310 = vrot.slane %v647, 5
        %1312 = vxpose.xlu0.b32.start [1/16] %v1310, 128
        %1313 = vxpose.xlu0.b32.cont [2/16] 0.0, 128
        %1314 = vxpose.xlu0.b32.cont [3/16] 0.0, 128
        %1315 = vxpose.xlu0.b32.cont [4/16] 0.0, 128
        %1316 = vxpose.xlu0.b32.cont [5/16] 0.0, 128
        %1317 = vxpose.xlu0.b32.cont [6/16] 0.0, 128
        %1318 = vxpose.xlu0.b32.cont [7/16] 0.0, 128
        %1319 = vxpose.xlu0.b32.cont [8/16] 0.0, 128
        %1320 = vxpose.xlu0.b32.cont [9/16] 0.0, 128
        %1321 = vxpose.xlu0.b32.cont [10/16] 0.0, 128
        %1322 = vxpose.xlu0.b32.cont [11/16] 0.0, 128
        %1323 = vxpose.xlu0.b32.cont [12/16] 0.0, 128
        %1324 = vxpose.xlu0.b32.cont [13/16] 0.0, 128
        %1325 = vxpose.xlu0.b32.cont [14/16] 0.0, 128
        %1326 = vxpose.xlu0.b32.cont [15/16] 0.0, 128
        %1327 = vxpose.xlu0.b32.end [16/16] 0.0, 128
        %v1328 = vpop.trf.xlu0
        %v1329 = vpop.trf.xlu0
        %v1330 = vpop.trf.xlu0
        %v1331 = vpop.trf.xlu0
        %v1332 = vpop.trf.xlu0
        %v1333 = vpop.trf.xlu0
        %v1334 = vpop.trf.xlu0
        %v1335 = vpop.trf.xlu0
        %v1336 = vpop.trf.xlu0
        %v1337 = vpop.trf.xlu0
        %v1338 = vpop.trf.xlu0
        %v1339 = vpop.trf.xlu0
        %v1340 = vpop.trf.xlu0
        %v1341 = vpop.trf.xlu0
        %v1342 = vpop.trf.xlu0
        %v1343 = vpop.trf.xlu0
        %v1344 = vrot.slane %v646, 5
        %v1346 = vsel %vm752, %v1328, 0
        %v1349 = vsel %vm752, %v1329, 0
        %v1351 = vsel %vm578, %v1344, 0
        %1353 = vmatprep.subr.mxu0 0.0
        %1354 = vmatpush1.msra.mxu0 0.0
        %1355 = vmatprep.subr.mxu0 0.0
        %1356 = vmatpush1.msra.mxu0 0.0
        %1357 = vmatprep.subr.mxu0 0.0
        %1358 = vmatpush1.msra.mxu0 0.0
        %1359 = vmatprep.subr.mxu0 0.0
        %1360 = vmatpush1.msra.mxu0 0.0
        %1361 = vmatprep.subr.mxu0 0.0
        %1362 = vmatpush1.msra.mxu0 0.0
        %1363 = vmatprep.subr.mxu0 0.0
        %1364 = vmatpush1.msra.mxu0 0.0
        %1365 = vmatprep.subr.mxu0 0.0
        %1366 = vmatpush1.msra.mxu0 0.0
        %1367 = vmatprep.subr.mxu0 0.0
        %1368 = vmatpush1.msra.mxu0 0.0
        %1369 = vmatprep.subr.mxu0 0.0
        %1370 = vmatpush1.msra.mxu0 0.0
        %1371 = vmatprep.subr.mxu0 0.0
        %1372 = vmatpush1.msra.mxu0 0.0
        %1373 = vmatprep.subr.mxu0 0.0
        %1374 = vmatpush1.msra.mxu0 0.0
        %1375 = vmatprep.subr.mxu0 0.0
        %1376 = vmatpush1.msra.mxu0 0.0
        %1377 = vmatprep.subr.mxu0 0.0
        %1378 = vmatpush1.msra.mxu0 0.0
        %1379 = vmatprep.subr.mxu0 0.0
        %1380 = vmatpush1.msra.mxu0 0.0
        %1381 = vmatprep.subr.mxu0 0.0
        %1382 = vmatpush1.msra.mxu0 0.0
        %1383 = vmatprep.subr.mxu0 0.0
        %1384 = vmatpush1.msra.mxu0 %v1351
        %1385 = vmatprep.subr.mxu0 0.0
        %1386 = vmatpush2.msra.mxu0 0.0
        %1387 = vmatprep.subr.mxu0 0.0
        %1388 = vmatpush2.msra.mxu0 0.0
        %1389 = vmatprep.subr.mxu0 0.0
        %1390 = vmatpush2.msra.mxu0 0.0
        %1391 = vmatprep.subr.mxu0 0.0
        %1392 = vmatpush2.msra.mxu0 0.0
        %1393 = vmatprep.subr.mxu0 0.0
        %1394 = vmatpush2.msra.mxu0 0.0
        %1395 = vmatprep.subr.mxu0 0.0
        %1396 = vmatpush2.msra.mxu0 0.0
        %1397 = vmatprep.subr.mxu0 0.0
        %1398 = vmatpush2.msra.mxu0 0.0
        %1399 = vmatprep.subr.mxu0 0.0
        %1400 = vmatpush2.msra.mxu0 0.0
        %1401 = vmatprep.subr.mxu0 0.0
        %1402 = vmatpush2.msra.mxu0 0.0
        %1403 = vmatprep.subr.mxu0 0.0
        %1404 = vmatpush2.msra.mxu0 0.0
        %1405 = vmatprep.subr.mxu0 0.0
        %1406 = vmatpush2.msra.mxu0 0.0
        %1407 = vmatprep.subr.mxu0 0.0
        %1408 = vmatpush2.msra.mxu0 0.0
        %1409 = vmatprep.subr.mxu0 0.0
        %1410 = vmatpush2.msra.mxu0 0.0
        %1411 = vmatprep.subr.mxu0 0.0
        %1412 = vmatpush2.msra.mxu0 0.0
        %1413 = vmatprep.subr.mxu0 0.0
        %1414 = vmatpush2.msra.mxu0 0.0
        %1415 = vmatprep.subr.mxu0 0.0
        %1416 = vmatpush2.msra.mxu0 0.0
        %1417 = vmatprep.mubr.f32.mxu0 0.0
        %1418 = vmatmul.mubr.f32.gmra.mxu0 %v1346
        %v1419 = vpop.f32.mrf.mxu0
        %v1420 = vadd.f32 0.0, %v1419
        %v1421 = vpop.f32.mrf.mxu0
        %1422 = vmatprep.mubr.f32.mxu0 0.0
        %1423 = vmatmul.mubr.f32.gmra.mxu0 %v1349
        %v1424 = vpop.f32.mrf.mxu0
        %v1425 = vadd.f32 0.0, %v1424
        %v1426 = vpop.f32.mrf.mxu0
        %1427 = vdwg.mxu0
        %v1428 = vrot.slane %v647, 6
        %1430 = vxpose.xlu0.b32.start [1/16] %v1428, 128
        %1431 = vxpose.xlu0.b32.cont [2/16] 0.0, 128
        %1432 = vxpose.xlu0.b32.cont [3/16] 0.0, 128
        %1433 = vxpose.xlu0.b32.cont [4/16] 0.0, 128
        %1434 = vxpose.xlu0.b32.cont [5/16] 0.0, 128
        %1435 = vxpose.xlu0.b32.cont [6/16] 0.0, 128
        %1436 = vxpose.xlu0.b32.cont [7/16] 0.0, 128
        %1437 = vxpose.xlu0.b32.cont [8/16] 0.0, 128
        %1438 = vxpose.xlu0.b32.cont [9/16] 0.0, 128
        %1439 = vxpose.xlu0.b32.cont [10/16] 0.0, 128
        %1440 = vxpose.xlu0.b32.cont [11/16] 0.0, 128
        %1441 = vxpose.xlu0.b32.cont [12/16] 0.0, 128
        %1442 = vxpose.xlu0.b32.cont [13/16] 0.0, 128
        %1443 = vxpose.xlu0.b32.cont [14/16] 0.0, 128
        %1444 = vxpose.xlu0.b32.cont [15/16] 0.0, 128
        %1445 = vxpose.xlu0.b32.end [16/16] 0.0, 128
        %v1446 = vpop.trf.xlu0
        %v1447 = vpop.trf.xlu0
        %v1448 = vpop.trf.xlu0
        %v1449 = vpop.trf.xlu0
        %v1450 = vpop.trf.xlu0
        %v1451 = vpop.trf.xlu0
        %v1452 = vpop.trf.xlu0
        %v1453 = vpop.trf.xlu0
        %v1454 = vpop.trf.xlu0
        %v1455 = vpop.trf.xlu0
        %v1456 = vpop.trf.xlu0
        %v1457 = vpop.trf.xlu0
        %v1458 = vpop.trf.xlu0
        %v1459 = vpop.trf.xlu0
        %v1460 = vpop.trf.xlu0
        %v1461 = vpop.trf.xlu0
        %v1462 = vrot.slane %v646, 6
        %v1464 = vsel %vm752, %v1446, 0
        %v1467 = vsel %vm752, %v1447, 0
        %v1469 = vsel %vm578, %v1462, 0
        %1471 = vmatprep.subr.mxu0 0.0
        %1472 = vmatpush1.msra.mxu0 0.0
        %1473 = vmatprep.subr.mxu0 0.0
        %1474 = vmatpush1.msra.mxu0 0.0
        %1475 = vmatprep.subr.mxu0 0.0
        %1476 = vmatpush1.msra.mxu0 0.0
        %1477 = vmatprep.subr.mxu0 0.0
        %1478 = vmatpush1.msra.mxu0 0.0
        %1479 = vmatprep.subr.mxu0 0.0
        %1480 = vmatpush1.msra.mxu0 0.0
        %1481 = vmatprep.subr.mxu0 0.0
        %1482 = vmatpush1.msra.mxu0 0.0
        %1483 = vmatprep.subr.mxu0 0.0
        %1484 = vmatpush1.msra.mxu0 0.0
        %1485 = vmatprep.subr.mxu0 0.0
        %1486 = vmatpush1.msra.mxu0 0.0
        %1487 = vmatprep.subr.mxu0 0.0
        %1488 = vmatpush1.msra.mxu0 0.0
        %1489 = vmatprep.subr.mxu0 0.0
        %1490 = vmatpush1.msra.mxu0 0.0
        %1491 = vmatprep.subr.mxu0 0.0
        %1492 = vmatpush1.msra.mxu0 0.0
        %1493 = vmatprep.subr.mxu0 0.0
        %1494 = vmatpush1.msra.mxu0 0.0
        %1495 = vmatprep.subr.mxu0 0.0
        %1496 = vmatpush1.msra.mxu0 0.0
        %1497 = vmatprep.subr.mxu0 0.0
        %1498 = vmatpush1.msra.mxu0 0.0
        %1499 = vmatprep.subr.mxu0 0.0
        %1500 = vmatpush1.msra.mxu0 0.0
        %1501 = vmatprep.subr.mxu0 0.0
        %1502 = vmatpush1.msra.mxu0 %v1469
        %1503 = vmatprep.subr.mxu0 0.0
        %1504 = vmatpush2.msra.mxu0 0.0
        %1505 = vmatprep.subr.mxu0 0.0
        %1506 = vmatpush2.msra.mxu0 0.0
        %1507 = vmatprep.subr.mxu0 0.0
        %1508 = vmatpush2.msra.mxu0 0.0
        %1509 = vmatprep.subr.mxu0 0.0
        %1510 = vmatpush2.msra.mxu0 0.0
        %1511 = vmatprep.subr.mxu0 0.0
        %1512 = vmatpush2.msra.mxu0 0.0
        %1513 = vmatprep.subr.mxu0 0.0
        %1514 = vmatpush2.msra.mxu0 0.0
        %1515 = vmatprep.subr.mxu0 0.0
        %1516 = vmatpush2.msra.mxu0 0.0
        %1517 = vmatprep.subr.mxu0 0.0
        %1518 = vmatpush2.msra.mxu0 0.0
        %1519 = vmatprep.subr.mxu0 0.0
        %1520 = vmatpush2.msra.mxu0 0.0
        %1521 = vmatprep.subr.mxu0 0.0
        %1522 = vmatpush2.msra.mxu0 0.0
        %1523 = vmatprep.subr.mxu0 0.0
        %1524 = vmatpush2.msra.mxu0 0.0
        %1525 = vmatprep.subr.mxu0 0.0
        %1526 = vmatpush2.msra.mxu0 0.0
        %1527 = vmatprep.subr.mxu0 0.0
        %1528 = vmatpush2.msra.mxu0 0.0
        %1529 = vmatprep.subr.mxu0 0.0
        %1530 = vmatpush2.msra.mxu0 0.0
        %1531 = vmatprep.subr.mxu0 0.0
        %1532 = vmatpush2.msra.mxu0 0.0
        %1533 = vmatprep.subr.mxu0 0.0
        %1534 = vmatpush2.msra.mxu0 0.0
        %1535 = vmatprep.mubr.f32.mxu0 0.0
        %1536 = vmatmul.mubr.f32.gmra.mxu0 %v1464
        %v1537 = vpop.f32.mrf.mxu0
        %v1538 = vadd.f32 0.0, %v1537
        %v1539 = vpop.f32.mrf.mxu0
        %1540 = vmatprep.mubr.f32.mxu0 0.0
        %1541 = vmatmul.mubr.f32.gmra.mxu0 %v1467
        %v1542 = vpop.f32.mrf.mxu0
        %v1543 = vadd.f32 0.0, %v1542
        %v1544 = vpop.f32.mrf.mxu0
        %1545 = vdwg.mxu0
        %v1546 = vrot.slane %v647, 7
        %1548 = vxpose.xlu0.b32.start [1/16] %v1546, 128
        %1549 = vxpose.xlu0.b32.cont [2/16] 0.0, 128
        %1550 = vxpose.xlu0.b32.cont [3/16] 0.0, 128
        %1551 = vxpose.xlu0.b32.cont [4/16] 0.0, 128
        %1552 = vxpose.xlu0.b32.cont [5/16] 0.0, 128
        %1553 = vxpose.xlu0.b32.cont [6/16] 0.0, 128
        %1554 = vxpose.xlu0.b32.cont [7/16] 0.0, 128
        %1555 = vxpose.xlu0.b32.cont [8/16] 0.0, 128
        %1556 = vxpose.xlu0.b32.cont [9/16] 0.0, 128
        %1557 = vxpose.xlu0.b32.cont [10/16] 0.0, 128
        %1558 = vxpose.xlu0.b32.cont [11/16] 0.0, 128
        %1559 = vxpose.xlu0.b32.cont [12/16] 0.0, 128
        %1560 = vxpose.xlu0.b32.cont [13/16] 0.0, 128
        %1561 = vxpose.xlu0.b32.cont [14/16] 0.0, 128
        %1562 = vxpose.xlu0.b32.cont [15/16] 0.0, 128
        %1563 = vxpose.xlu0.b32.end [16/16] 0.0, 128
        %v1564 = vpop.trf.xlu0
        %v1565 = vpop.trf.xlu0
        %v1566 = vpop.trf.xlu0
        %v1567 = vpop.trf.xlu0
        %v1568 = vpop.trf.xlu0
        %v1569 = vpop.trf.xlu0
        %v1570 = vpop.trf.xlu0
        %v1571 = vpop.trf.xlu0
        %v1572 = vpop.trf.xlu0
        %v1573 = vpop.trf.xlu0
        %v1574 = vpop.trf.xlu0
        %v1575 = vpop.trf.xlu0
        %v1576 = vpop.trf.xlu0
        %v1577 = vpop.trf.xlu0
        %v1578 = vpop.trf.xlu0
        %v1579 = vpop.trf.xlu0
        %v1580 = vrot.slane %v646, 7
        %v1582 = vsel %vm752, %v1564, 0
        %v1585 = vsel %vm752, %v1565, 0
        %v1587 = vsel %vm578, %v1580, 0
        %1589 = vmatprep.subr.mxu0 0.0
        %1590 = vmatpush1.msra.mxu0 0.0
        %1591 = vmatprep.subr.mxu0 0.0
        %1592 = vmatpush1.msra.mxu0 0.0
        %1593 = vmatprep.subr.mxu0 0.0
        %1594 = vmatpush1.msra.mxu0 0.0
        %1595 = vmatprep.subr.mxu0 0.0
        %1596 = vmatpush1.msra.mxu0 0.0
        %1597 = vmatprep.subr.mxu0 0.0
        %1598 = vmatpush1.msra.mxu0 0.0
        %1599 = vmatprep.subr.mxu0 0.0
        %1600 = vmatpush1.msra.mxu0 0.0
        %1601 = vmatprep.subr.mxu0 0.0
        %1602 = vmatpush1.msra.mxu0 0.0
        %1603 = vmatprep.subr.mxu0 0.0
        %1604 = vmatpush1.msra.mxu0 0.0
        %1605 = vmatprep.subr.mxu0 0.0
        %1606 = vmatpush1.msra.mxu0 0.0
        %1607 = vmatprep.subr.mxu0 0.0
        %1608 = vmatpush1.msra.mxu0 0.0
        %1609 = vmatprep.subr.mxu0 0.0
        %1610 = vmatpush1.msra.mxu0 0.0
        %1611 = vmatprep.subr.mxu0 0.0
        %1612 = vmatpush1.msra.mxu0 0.0
        %1613 = vmatprep.subr.mxu0 0.0
        %1614 = vmatpush1.msra.mxu0 0.0
        %1615 = vmatprep.subr.mxu0 0.0
        %1616 = vmatpush1.msra.mxu0 0.0
        %1617 = vmatprep.subr.mxu0 0.0
        %1618 = vmatpush1.msra.mxu0 0.0
        %1619 = vmatprep.subr.mxu0 0.0
        %1620 = vmatpush1.msra.mxu0 %v1587
        %1621 = vmatprep.subr.mxu0 0.0
        %1622 = vmatpush2.msra.mxu0 0.0
        %1623 = vmatprep.subr.mxu0 0.0
        %1624 = vmatpush2.msra.mxu0 0.0
        %1625 = vmatprep.subr.mxu0 0.0
        %1626 = vmatpush2.msra.mxu0 0.0
        %1627 = vmatprep.subr.mxu0 0.0
        %1628 = vmatpush2.msra.mxu0 0.0
        %1629 = vmatprep.subr.mxu0 0.0
        %1630 = vmatpush2.msra.mxu0 0.0
        %1631 = vmatprep.subr.mxu0 0.0
        %1632 = vmatpush2.msra.mxu0 0.0
        %1633 = vmatprep.subr.mxu0 0.0
        %1634 = vmatpush2.msra.mxu0 0.0
        %1635 = vmatprep.subr.mxu0 0.0
        %1636 = vmatpush2.msra.mxu0 0.0
        %1637 = vmatprep.subr.mxu0 0.0
        %1638 = vmatpush2.msra.mxu0 0.0
        %1639 = vmatprep.subr.mxu0 0.0
        %1640 = vmatpush2.msra.mxu0 0.0
        %1641 = vmatprep.subr.mxu0 0.0
        %1642 = vmatpush2.msra.mxu0 0.0
        %1643 = vmatprep.subr.mxu0 0.0
        %1644 = vmatpush2.msra.mxu0 0.0
        %1645 = vmatprep.subr.mxu0 0.0
        %1646 = vmatpush2.msra.mxu0 0.0
        %1647 = vmatprep.subr.mxu0 0.0
        %1648 = vmatpush2.msra.mxu0 0.0
        %1649 = vmatprep.subr.mxu0 0.0
        %1650 = vmatpush2.msra.mxu0 0.0
        %1651 = vmatprep.subr.mxu0 0.0
        %1652 = vmatpush2.msra.mxu0 0.0
        %1653 = vmatprep.mubr.f32.mxu0 0.0
        %1654 = vmatmul.mubr.f32.gmra.mxu0 %v1582
        %v1655 = vpop.f32.mrf.mxu0
        %v1656 = vadd.f32 0.0, %v1655
        %v1657 = vpop.f32.mrf.mxu0
        %1658 = vmatprep.mubr.f32.mxu0 0.0
        %1659 = vmatmul.mubr.f32.gmra.mxu0 %v1585
        %v1660 = vpop.f32.mrf.mxu0
        %v1661 = vadd.f32 0.0, %v1660
        %v1662 = vpop.f32.mrf.mxu0
        %1663 = vdwg.mxu0
        %v1664 = vunpack.c.l.bf16 %v660
        %v1665 = vunpack.c.h.bf16 %v660
        %v1666 = vmul.f32 %v1664, 0.0
        %v1667 = vmul.f32 %v1665, 0.0
        %v1668 = vadd.f32 %v1666, %v829
        %v1669 = vadd.f32 %v1667, %v834
        %v1670 = vunpack.c.l.bf16 %v671
        %v1671 = vunpack.c.h.bf16 %v671
        %v1672 = vmul.f32 %v1670, %v1668
        %v1673 = vmul.f32 %v1671, %v1669
        %v1674 = vadd.f32 %v1672, %v948
        %v1675 = vadd.f32 %v1673, %v953
        %v1676 = vunpack.c.l.bf16 %v679
        %v1677 = vunpack.c.h.bf16 %v679
        %v1678 = vmul.f32 %v1676, %v1674
        %v1679 = vmul.f32 %v1677, %v1675
        %v1680 = vadd.f32 %v1678, %v1066
        %v1681 = vadd.f32 %v1679, %v1071
        %v1682 = vunpack.c.l.bf16 %v687
        %v1683 = vunpack.c.h.bf16 %v687
        %v1684 = vmul.f32 %v1682, %v1680
        %v1685 = vmul.f32 %v1683, %v1681
        %v1686 = vadd.f32 %v1684, %v1184
        %v1687 = vadd.f32 %v1685, %v1189
        %v1688 = vunpack.c.l.bf16 %v695
        %v1689 = vunpack.c.h.bf16 %v695
        %v1690 = vmul.f32 %v1688, %v1686
        %v1691 = vmul.f32 %v1689, %v1687
        %v1692 = vadd.f32 %v1690, %v1302
        %v1693 = vadd.f32 %v1691, %v1307
        %v1694 = vunpack.c.l.bf16 %v703
        %v1695 = vunpack.c.h.bf16 %v703
        %v1696 = vmul.f32 %v1694, %v1692
        %v1697 = vmul.f32 %v1695, %v1693
        %v1698 = vadd.f32 %v1696, %v1420
        %v1699 = vadd.f32 %v1697, %v1425
        %v1700 = vunpack.c.l.bf16 %v711
        %v1701 = vunpack.c.h.bf16 %v711
        %v1702 = vmul.f32 %v1700, %v1698
        %v1703 = vmul.f32 %v1701, %v1699
        %v1704 = vadd.f32 %v1702, %v1538
        %v1705 = vadd.f32 %v1703, %v1543
        %v1706 = vunpack.c.l.bf16 %v719
        %v1707 = vunpack.c.h.bf16 %v719
        %v1708 = vmul.f32 %v1706, %v1704
        %v1709 = vmul.f32 %v1707, %v1705
        %v1710 = vadd.f32 %v1708, %v1656
        %v1711 = vadd.f32 %v1709, %v1661
        %v1713 = vsel %vm636, %v648, 0
        %1715 = vmatprep.subr.mxu0 0.0
        %1716 = vmatpush1.msra.mxu0 0.0
        %1717 = vmatprep.subr.mxu0 0.0
        %1718 = vmatpush1.msra.mxu0 0.0
        %1719 = vmatprep.subr.mxu0 0.0
        %1720 = vmatpush1.msra.mxu0 0.0
        %1721 = vmatprep.subr.mxu0 0.0
        %1722 = vmatpush1.msra.mxu0 0.0
        %1723 = vmatprep.subr.mxu0 0.0
        %1724 = vmatpush1.msra.mxu0 0.0
        %1725 = vmatprep.subr.mxu0 0.0
        %1726 = vmatpush1.msra.mxu0 0.0
        %1727 = vmatprep.subr.mxu0 0.0
        %1728 = vmatpush1.msra.mxu0 0.0
        %1729 = vmatprep.subr.mxu0 0.0
        %1730 = vmatpush1.msra.mxu0 0.0
        %1731 = vmatprep.subr.mxu0 0.0
        %1732 = vmatpush1.msra.mxu0 0.0
        %1733 = vmatprep.subr.mxu0 0.0
        %1734 = vmatpush1.msra.mxu0 0.0
        %1735 = vmatprep.subr.mxu0 0.0
        %1736 = vmatpush1.msra.mxu0 0.0
        %1737 = vmatprep.subr.mxu0 0.0
        %1738 = vmatpush1.msra.mxu0 0.0
        %1739 = vmatprep.subr.mxu0 0.0
        %1740 = vmatpush1.msra.mxu0 0.0
        %1741 = vmatprep.subr.mxu0 0.0
        %1742 = vmatpush1.msra.mxu0 0.0
        %1743 = vmatprep.subr.mxu0 0.0
        %1744 = vmatpush1.msra.mxu0 %v1669
        %1745 = vmatprep.subr.mxu0 0.0
        %1746 = vmatpush1.msra.mxu0 %v1668
        %1747 = vmatprep.subr.mxu0 0.0
        %1748 = vmatpush2.msra.mxu0 0.0
        %1749 = vmatprep.subr.mxu0 0.0
        %1750 = vmatpush2.msra.mxu0 0.0
        %1751 = vmatprep.subr.mxu0 0.0
        %1752 = vmatpush2.msra.mxu0 0.0
        %1753 = vmatprep.subr.mxu0 0.0
        %1754 = vmatpush2.msra.mxu0 0.0
        %1755 = vmatprep.subr.mxu0 0.0
        %1756 = vmatpush2.msra.mxu0 0.0
        %1757 = vmatprep.subr.mxu0 0.0
        %1758 = vmatpush2.msra.mxu0 0.0
        %1759 = vmatprep.subr.mxu0 0.0
        %1760 = vmatpush2.msra.mxu0 0.0
        %1761 = vmatprep.subr.mxu0 0.0
        %1762 = vmatpush2.msra.mxu0 0.0
        %1763 = vmatprep.subr.mxu0 0.0
        %1764 = vmatpush2.msra.mxu0 0.0
        %1765 = vmatprep.subr.mxu0 0.0
        %1766 = vmatpush2.msra.mxu0 0.0
        %1767 = vmatprep.subr.mxu0 0.0
        %1768 = vmatpush2.msra.mxu0 0.0
        %1769 = vmatprep.subr.mxu0 0.0
        %1770 = vmatpush2.msra.mxu0 0.0
        %1771 = vmatprep.subr.mxu0 0.0
        %1772 = vmatpush2.msra.mxu0 0.0
        %1773 = vmatprep.subr.mxu0 0.0
        %1774 = vmatpush2.msra.mxu0 0.0
        %1775 = vmatprep.subr.mxu0 0.0
        %1776 = vmatpush2.msra.mxu0 0.0
        %1777 = vmatprep.subr.mxu0 0.0
        %1778 = vmatpush2.msra.mxu0 0.0
        %1779 = vmatprep.mubr.f32.mxu0 0.0
        %1780 = vmatmul.mubr.f32.gmra.mxu0 %v1713
        %v1781 = vpop.f32.mrf.mxu0
        %v1782 = vadd.f32 0.0, %v1781
        %v1783 = vpop.f32.mrf.mxu0
        %1784 = vdwg.mxu0
        %v1785 = vrot.slane %v648, 1
        %v1786 = vsel %vm636, %v1785, 0
        %1788 = vmatprep.subr.mxu0 0.0
        %1789 = vmatpush1.msra.mxu0 0.0
        %1790 = vmatprep.subr.mxu0 0.0
        %1791 = vmatpush1.msra.mxu0 0.0
        %1792 = vmatprep.subr.mxu0 0.0
        %1793 = vmatpush1.msra.mxu0 0.0
        %1794 = vmatprep.subr.mxu0 0.0
        %1795 = vmatpush1.msra.mxu0 0.0
        %1796 = vmatprep.subr.mxu0 0.0
        %1797 = vmatpush1.msra.mxu0 0.0
        %1798 = vmatprep.subr.mxu0 0.0
        %1799 = vmatpush1.msra.mxu0 0.0
        %1800 = vmatprep.subr.mxu0 0.0
        %1801 = vmatpush1.msra.mxu0 0.0
        %1802 = vmatprep.subr.mxu0 0.0
        %1803 = vmatpush1.msra.mxu0 0.0
        %1804 = vmatprep.subr.mxu0 0.0
        %1805 = vmatpush1.msra.mxu0 0.0
        %1806 = vmatprep.subr.mxu0 0.0
        %1807 = vmatpush1.msra.mxu0 0.0
        %1808 = vmatprep.subr.mxu0 0.0
        %1809 = vmatpush1.msra.mxu0 0.0
        %1810 = vmatprep.subr.mxu0 0.0
        %1811 = vmatpush1.msra.mxu0 0.0
        %1812 = vmatprep.subr.mxu0 0.0
        %1813 = vmatpush1.msra.mxu0 0.0
        %1814 = vmatprep.subr.mxu0 0.0
        %1815 = vmatpush1.msra.mxu0 0.0
        %1816 = vmatprep.subr.mxu0 0.0
        %1817 = vmatpush1.msra.mxu0 %v1675
        %1818 = vmatprep.subr.mxu0 0.0
        %1819 = vmatpush1.msra.mxu0 %v1674
        %1820 = vmatprep.subr.mxu0 0.0
        %1821 = vmatpush2.msra.mxu0 0.0
        %1822 = vmatprep.subr.mxu0 0.0
        %1823 = vmatpush2.msra.mxu0 0.0
        %1824 = vmatprep.subr.mxu0 0.0
        %1825 = vmatpush2.msra.mxu0 0.0
        %1826 = vmatprep.subr.mxu0 0.0
        %1827 = vmatpush2.msra.mxu0 0.0
        %1828 = vmatprep.subr.mxu0 0.0
        %1829 = vmatpush2.msra.mxu0 0.0
        %1830 = vmatprep.subr.mxu0 0.0
        %1831 = vmatpush2.msra.mxu0 0.0
        %1832 = vmatprep.subr.mxu0 0.0
        %1833 = vmatpush2.msra.mxu0 0.0
        %1834 = vmatprep.subr.mxu0 0.0
        %1835 = vmatpush2.msra.mxu0 0.0
        %1836 = vmatprep.subr.mxu0 0.0
        %1837 = vmatpush2.msra.mxu0 0.0
        %1838 = vmatprep.subr.mxu0 0.0
        %1839 = vmatpush2.msra.mxu0 0.0
        %1840 = vmatprep.subr.mxu0 0.0
        %1841 = vmatpush2.msra.mxu0 0.0
        %1842 = vmatprep.subr.mxu0 0.0
        %1843 = vmatpush2.msra.mxu0 0.0
        %1844 = vmatprep.subr.mxu0 0.0
        %1845 = vmatpush2.msra.mxu0 0.0
        %1846 = vmatprep.subr.mxu0 0.0
        %1847 = vmatpush2.msra.mxu0 0.0
        %1848 = vmatprep.subr.mxu0 0.0
        %1849 = vmatpush2.msra.mxu0 0.0
        %1850 = vmatprep.subr.mxu0 0.0
        %1851 = vmatpush2.msra.mxu0 0.0
        %1852 = vmatprep.mubr.f32.mxu0 0.0
        %1853 = vmatmul.mubr.f32.gmra.mxu0 %v1786
        %v1854 = vpop.f32.mrf.mxu0
        %v1855 = vadd.f32 0.0, %v1854
        %v1856 = vpop.f32.mrf.mxu0
        %1857 = vdwg.mxu0
        %v1858 = vrot.slane %v648, 2
        %v1859 = vsel %vm636, %v1858, 0
        %1861 = vmatprep.subr.mxu0 0.0
        %1862 = vmatpush1.msra.mxu0 0.0
        %1863 = vmatprep.subr.mxu0 0.0
        %1864 = vmatpush1.msra.mxu0 0.0
        %1865 = vmatprep.subr.mxu0 0.0
        %1866 = vmatpush1.msra.mxu0 0.0
        %1867 = vmatprep.subr.mxu0 0.0
        %1868 = vmatpush1.msra.mxu0 0.0
        %1869 = vmatprep.subr.mxu0 0.0
        %1870 = vmatpush1.msra.mxu0 0.0
        %1871 = vmatprep.subr.mxu0 0.0
        %1872 = vmatpush1.msra.mxu0 0.0
        %1873 = vmatprep.subr.mxu0 0.0
        %1874 = vmatpush1.msra.mxu0 0.0
        %1875 = vmatprep.subr.mxu0 0.0
        %1876 = vmatpush1.msra.mxu0 0.0
        %1877 = vmatprep.subr.mxu0 0.0
        %1878 = vmatpush1.msra.mxu0 0.0
        %1879 = vmatprep.subr.mxu0 0.0
        %1880 = vmatpush1.msra.mxu0 0.0
        %1881 = vmatprep.subr.mxu0 0.0
        %1882 = vmatpush1.msra.mxu0 0.0
        %1883 = vmatprep.subr.mxu0 0.0
        %1884 = vmatpush1.msra.mxu0 0.0
        %1885 = vmatprep.subr.mxu0 0.0
        %1886 = vmatpush1.msra.mxu0 0.0
        %1887 = vmatprep.subr.mxu0 0.0
        %1888 = vmatpush1.msra.mxu0 0.0
        %1889 = vmatprep.subr.mxu0 0.0
        %1890 = vmatpush1.msra.mxu0 %v1681
        %1891 = vmatprep.subr.mxu0 0.0
        %1892 = vmatpush1.msra.mxu0 %v1680
        %1893 = vmatprep.subr.mxu0 0.0
        %1894 = vmatpush2.msra.mxu0 0.0
        %1895 = vmatprep.subr.mxu0 0.0
        %1896 = vmatpush2.msra.mxu0 0.0
        %1897 = vmatprep.subr.mxu0 0.0
        %1898 = vmatpush2.msra.mxu0 0.0
        %1899 = vmatprep.subr.mxu0 0.0
        %1900 = vmatpush2.msra.mxu0 0.0
        %1901 = vmatprep.subr.mxu0 0.0
        %1902 = vmatpush2.msra.mxu0 0.0
        %1903 = vmatprep.subr.mxu0 0.0
        %1904 = vmatpush2.msra.mxu0 0.0
        %1905 = vmatprep.subr.mxu0 0.0
        %1906 = vmatpush2.msra.mxu0 0.0
        %1907 = vmatprep.subr.mxu0 0.0
        %1908 = vmatpush2.msra.mxu0 0.0
        %1909 = vmatprep.subr.mxu0 0.0
        %1910 = vmatpush2.msra.mxu0 0.0
        %1911 = vmatprep.subr.mxu0 0.0
        %1912 = vmatpush2.msra.mxu0 0.0
        %1913 = vmatprep.subr.mxu0 0.0
        %1914 = vmatpush2.msra.mxu0 0.0
        %1915 = vmatprep.subr.mxu0 0.0
        %1916 = vmatpush2.msra.mxu0 0.0
        %1917 = vmatprep.subr.mxu0 0.0
        %1918 = vmatpush2.msra.mxu0 0.0
        %1919 = vmatprep.subr.mxu0 0.0
        %1920 = vmatpush2.msra.mxu0 0.0
        %1921 = vmatprep.subr.mxu0 0.0
        %1922 = vmatpush2.msra.mxu0 0.0
        %1923 = vmatprep.subr.mxu0 0.0
        %1924 = vmatpush2.msra.mxu0 0.0
        %1925 = vmatprep.mubr.f32.mxu0 0.0
        %1926 = vmatmul.mubr.f32.gmra.mxu0 %v1859
        %v1927 = vpop.f32.mrf.mxu0
        %v1928 = vadd.f32 0.0, %v1927
        %v1929 = vpop.f32.mrf.mxu0
        %1930 = vdwg.mxu0
        %v1931 = vrot.slane %v648, 3
        %v1932 = vsel %vm636, %v1931, 0
        %1934 = vmatprep.subr.mxu0 0.0
        %1935 = vmatpush1.msra.mxu0 0.0
        %1936 = vmatprep.subr.mxu0 0.0
        %1937 = vmatpush1.msra.mxu0 0.0
        %1938 = vmatprep.subr.mxu0 0.0
        %1939 = vmatpush1.msra.mxu0 0.0
        %1940 = vmatprep.subr.mxu0 0.0
        %1941 = vmatpush1.msra.mxu0 0.0
        %1942 = vmatprep.subr.mxu0 0.0
        %1943 = vmatpush1.msra.mxu0 0.0
        %1944 = vmatprep.subr.mxu0 0.0
        %1945 = vmatpush1.msra.mxu0 0.0
        %1946 = vmatprep.subr.mxu0 0.0
        %1947 = vmatpush1.msra.mxu0 0.0
        %1948 = vmatprep.subr.mxu0 0.0
        %1949 = vmatpush1.msra.mxu0 0.0
        %1950 = vmatprep.subr.mxu0 0.0
        %1951 = vmatpush1.msra.mxu0 0.0
        %1952 = vmatprep.subr.mxu0 0.0
        %1953 = vmatpush1.msra.mxu0 0.0
        %1954 = vmatprep.subr.mxu0 0.0
        %1955 = vmatpush1.msra.mxu0 0.0
        %1956 = vmatprep.subr.mxu0 0.0
        %1957 = vmatpush1.msra.mxu0 0.0
        %1958 = vmatprep.subr.mxu0 0.0
        %1959 = vmatpush1.msra.mxu0 0.0
        %1960 = vmatprep.subr.mxu0 0.0
        %1961 = vmatpush1.msra.mxu0 0.0
        %1962 = vmatprep.subr.mxu0 0.0
        %1963 = vmatpush1.msra.mxu0 %v1687
        %1964 = vmatprep.subr.mxu0 0.0
        %1965 = vmatpush1.msra.mxu0 %v1686
        %1966 = vmatprep.subr.mxu0 0.0
        %1967 = vmatpush2.msra.mxu0 0.0
        %1968 = vmatprep.subr.mxu0 0.0
        %1969 = vmatpush2.msra.mxu0 0.0
        %1970 = vmatprep.subr.mxu0 0.0
        %1971 = vmatpush2.msra.mxu0 0.0
        %1972 = vmatprep.subr.mxu0 0.0
        %1973 = vmatpush2.msra.mxu0 0.0
        %1974 = vmatprep.subr.mxu0 0.0
        %1975 = vmatpush2.msra.mxu0 0.0
        %1976 = vmatprep.subr.mxu0 0.0
        %1977 = vmatpush2.msra.mxu0 0.0
        %1978 = vmatprep.subr.mxu0 0.0
        %1979 = vmatpush2.msra.mxu0 0.0
        %1980 = vmatprep.subr.mxu0 0.0
        %1981 = vmatpush2.msra.mxu0 0.0
        %1982 = vmatprep.subr.mxu0 0.0
        %1983 = vmatpush2.msra.mxu0 0.0
        %1984 = vmatprep.subr.mxu0 0.0
        %1985 = vmatpush2.msra.mxu0 0.0
        %1986 = vmatprep.subr.mxu0 0.0
        %1987 = vmatpush2.msra.mxu0 0.0
        %1988 = vmatprep.subr.mxu0 0.0
        %1989 = vmatpush2.msra.mxu0 0.0
        %1990 = vmatprep.subr.mxu0 0.0
        %1991 = vmatpush2.msra.mxu0 0.0
        %1992 = vmatprep.subr.mxu0 0.0
        %1993 = vmatpush2.msra.mxu0 0.0
        %1994 = vmatprep.subr.mxu0 0.0
        %1995 = vmatpush2.msra.mxu0 0.0
        %1996 = vmatprep.subr.mxu0 0.0
        %1997 = vmatpush2.msra.mxu0 0.0
        %1998 = vmatprep.mubr.f32.mxu0 0.0
        %1999 = vmatmul.mubr.f32.gmra.mxu0 %v1932
        %v2000 = vpop.f32.mrf.mxu0
        %v2001 = vadd.f32 0.0, %v2000
        %v2002 = vpop.f32.mrf.mxu0
        %2003 = vdwg.mxu0
        %v2004 = vrot.slane %v648, 4
        %v2005 = vsel %vm636, %v2004, 0
        %2007 = vmatprep.subr.mxu0 0.0
        %2008 = vmatpush1.msra.mxu0 0.0
        %2009 = vmatprep.subr.mxu0 0.0
        %2010 = vmatpush1.msra.mxu0 0.0
        %2011 = vmatprep.subr.mxu0 0.0
        %2012 = vmatpush1.msra.mxu0 0.0
        %2013 = vmatprep.subr.mxu0 0.0
        %2014 = vmatpush1.msra.mxu0 0.0
        %2015 = vmatprep.subr.mxu0 0.0
        %2016 = vmatpush1.msra.mxu0 0.0
        %2017 = vmatprep.subr.mxu0 0.0
        %2018 = vmatpush1.msra.mxu0 0.0
        %2019 = vmatprep.subr.mxu0 0.0
        %2020 = vmatpush1.msra.mxu0 0.0
        %2021 = vmatprep.subr.mxu0 0.0
        %2022 = vmatpush1.msra.mxu0 0.0
        %2023 = vmatprep.subr.mxu0 0.0
        %2024 = vmatpush1.msra.mxu0 0.0
        %2025 = vmatprep.subr.mxu0 0.0
        %2026 = vmatpush1.msra.mxu0 0.0
        %2027 = vmatprep.subr.mxu0 0.0
        %2028 = vmatpush1.msra.mxu0 0.0
        %2029 = vmatprep.subr.mxu0 0.0
        %2030 = vmatpush1.msra.mxu0 0.0
        %2031 = vmatprep.subr.mxu0 0.0
        %2032 = vmatpush1.msra.mxu0 0.0
        %2033 = vmatprep.subr.mxu0 0.0
        %2034 = vmatpush1.msra.mxu0 0.0
        %2035 = vmatprep.subr.mxu0 0.0
        %2036 = vmatpush1.msra.mxu0 %v1693
        %2037 = vmatprep.subr.mxu0 0.0
        %2038 = vmatpush1.msra.mxu0 %v1692
        %2039 = vmatprep.subr.mxu0 0.0
        %2040 = vmatpush2.msra.mxu0 0.0
        %2041 = vmatprep.subr.mxu0 0.0
        %2042 = vmatpush2.msra.mxu0 0.0
        %2043 = vmatprep.subr.mxu0 0.0
        %2044 = vmatpush2.msra.mxu0 0.0
        %2045 = vmatprep.subr.mxu0 0.0
        %2046 = vmatpush2.msra.mxu0 0.0
        %2047 = vmatprep.subr.mxu0 0.0
        %2048 = vmatpush2.msra.mxu0 0.0
        %2049 = vmatprep.subr.mxu0 0.0
        %2050 = vmatpush2.msra.mxu0 0.0
        %2051 = vmatprep.subr.mxu0 0.0
        %2052 = vmatpush2.msra.mxu0 0.0
        %2053 = vmatprep.subr.mxu0 0.0
        %2054 = vmatpush2.msra.mxu0 0.0
        %2055 = vmatprep.subr.mxu0 0.0
        %2056 = vmatpush2.msra.mxu0 0.0
        %2057 = vmatprep.subr.mxu0 0.0
        %2058 = vmatpush2.msra.mxu0 0.0
        %2059 = vmatprep.subr.mxu0 0.0
        %2060 = vmatpush2.msra.mxu0 0.0
        %2061 = vmatprep.subr.mxu0 0.0
        %2062 = vmatpush2.msra.mxu0 0.0
        %2063 = vmatprep.subr.mxu0 0.0
        %2064 = vmatpush2.msra.mxu0 0.0
        %2065 = vmatprep.subr.mxu0 0.0
        %2066 = vmatpush2.msra.mxu0 0.0
        %2067 = vmatprep.subr.mxu0 0.0
        %2068 = vmatpush2.msra.mxu0 0.0
        %2069 = vmatprep.subr.mxu0 0.0
        %2070 = vmatpush2.msra.mxu0 0.0
        %2071 = vmatprep.mubr.f32.mxu0 0.0
        %2072 = vmatmul.mubr.f32.gmra.mxu0 %v2005
        %v2073 = vpop.f32.mrf.mxu0
        %v2074 = vadd.f32 0.0, %v2073
        %v2075 = vpop.f32.mrf.mxu0
        %2076 = vdwg.mxu0
        %v2077 = vrot.slane %v648, 5
        %v2078 = vsel %vm636, %v2077, 0
        %2080 = vmatprep.subr.mxu0 0.0
        %2081 = vmatpush1.msra.mxu0 0.0
        %2082 = vmatprep.subr.mxu0 0.0
        %2083 = vmatpush1.msra.mxu0 0.0
        %2084 = vmatprep.subr.mxu0 0.0
        %2085 = vmatpush1.msra.mxu0 0.0
        %2086 = vmatprep.subr.mxu0 0.0
        %2087 = vmatpush1.msra.mxu0 0.0
        %2088 = vmatprep.subr.mxu0 0.0
        %2089 = vmatpush1.msra.mxu0 0.0
        %2090 = vmatprep.subr.mxu0 0.0
        %2091 = vmatpush1.msra.mxu0 0.0
        %2092 = vmatprep.subr.mxu0 0.0
        %2093 = vmatpush1.msra.mxu0 0.0
        %2094 = vmatprep.subr.mxu0 0.0
        %2095 = vmatpush1.msra.mxu0 0.0
        %2096 = vmatprep.subr.mxu0 0.0
        %2097 = vmatpush1.msra.mxu0 0.0
        %2098 = vmatprep.subr.mxu0 0.0
        %2099 = vmatpush1.msra.mxu0 0.0
        %2100 = vmatprep.subr.mxu0 0.0
        %2101 = vmatpush1.msra.mxu0 0.0
        %2102 = vmatprep.subr.mxu0 0.0
        %2103 = vmatpush1.msra.mxu0 0.0
        %2104 = vmatprep.subr.mxu0 0.0
        %2105 = vmatpush1.msra.mxu0 0.0
        %2106 = vmatprep.subr.mxu0 0.0
        %2107 = vmatpush1.msra.mxu0 0.0
        %2108 = vmatprep.subr.mxu0 0.0
        %2109 = vmatpush1.msra.mxu0 %v1699
        %2110 = vmatprep.subr.mxu0 0.0
        %2111 = vmatpush1.msra.mxu0 %v1698
        %2112 = vmatprep.subr.mxu0 0.0
        %2113 = vmatpush2.msra.mxu0 0.0
        %2114 = vmatprep.subr.mxu0 0.0
        %2115 = vmatpush2.msra.mxu0 0.0
        %2116 = vmatprep.subr.mxu0 0.0
        %2117 = vmatpush2.msra.mxu0 0.0
        %2118 = vmatprep.subr.mxu0 0.0
        %2119 = vmatpush2.msra.mxu0 0.0
        %2120 = vmatprep.subr.mxu0 0.0
        %2121 = vmatpush2.msra.mxu0 0.0
        %2122 = vmatprep.subr.mxu0 0.0
        %2123 = vmatpush2.msra.mxu0 0.0
        %2124 = vmatprep.subr.mxu0 0.0
        %2125 = vmatpush2.msra.mxu0 0.0
        %2126 = vmatprep.subr.mxu0 0.0
        %2127 = vmatpush2.msra.mxu0 0.0
        %2128 = vmatprep.subr.mxu0 0.0
        %2129 = vmatpush2.msra.mxu0 0.0
        %2130 = vmatprep.subr.mxu0 0.0
        %2131 = vmatpush2.msra.mxu0 0.0
        %2132 = vmatprep.subr.mxu0 0.0
        %2133 = vmatpush2.msra.mxu0 0.0
        %2134 = vmatprep.subr.mxu0 0.0
        %2135 = vmatpush2.msra.mxu0 0.0
        %2136 = vmatprep.subr.mxu0 0.0
        %2137 = vmatpush2.msra.mxu0 0.0
        %2138 = vmatprep.subr.mxu0 0.0
        %2139 = vmatpush2.msra.mxu0 0.0
        %2140 = vmatprep.subr.mxu0 0.0
        %2141 = vmatpush2.msra.mxu0 0.0
        %2142 = vmatprep.subr.mxu0 0.0
        %2143 = vmatpush2.msra.mxu0 0.0
        %2144 = vmatprep.mubr.f32.mxu0 0.0
        %2145 = vmatmul.mubr.f32.gmra.mxu0 %v2078
        %v2146 = vpop.f32.mrf.mxu0
        %v2147 = vadd.f32 0.0, %v2146
        %v2148 = vpop.f32.mrf.mxu0
        %2149 = vdwg.mxu0
        %v2150 = vrot.slane %v648, 6
        %v2151 = vsel %vm636, %v2150, 0
        %2153 = vmatprep.subr.mxu0 0.0
        %2154 = vmatpush1.msra.mxu0 0.0
        %2155 = vmatprep.subr.mxu0 0.0
        %2156 = vmatpush1.msra.mxu0 0.0
        %2157 = vmatprep.subr.mxu0 0.0
        %2158 = vmatpush1.msra.mxu0 0.0
        %2159 = vmatprep.subr.mxu0 0.0
        %2160 = vmatpush1.msra.mxu0 0.0
        %2161 = vmatprep.subr.mxu0 0.0
        %2162 = vmatpush1.msra.mxu0 0.0
        %2163 = vmatprep.subr.mxu0 0.0
        %2164 = vmatpush1.msra.mxu0 0.0
        %2165 = vmatprep.subr.mxu0 0.0
        %2166 = vmatpush1.msra.mxu0 0.0
        %2167 = vmatprep.subr.mxu0 0.0
        %2168 = vmatpush1.msra.mxu0 0.0
        %2169 = vmatprep.subr.mxu0 0.0
        %2170 = vmatpush1.msra.mxu0 0.0
        %2171 = vmatprep.subr.mxu0 0.0
        %2172 = vmatpush1.msra.mxu0 0.0
        %2173 = vmatprep.subr.mxu0 0.0
        %2174 = vmatpush1.msra.mxu0 0.0
        %2175 = vmatprep.subr.mxu0 0.0
        %2176 = vmatpush1.msra.mxu0 0.0
        %2177 = vmatprep.subr.mxu0 0.0
        %2178 = vmatpush1.msra.mxu0 0.0
        %2179 = vmatprep.subr.mxu0 0.0
        %2180 = vmatpush1.msra.mxu0 0.0
        %2181 = vmatprep.subr.mxu0 0.0
        %2182 = vmatpush1.msra.mxu0 %v1705
        %2183 = vmatprep.subr.mxu0 0.0
        %2184 = vmatpush1.msra.mxu0 %v1704
        %2185 = vmatprep.subr.mxu0 0.0
        %2186 = vmatpush2.msra.mxu0 0.0
        %2187 = vmatprep.subr.mxu0 0.0
        %2188 = vmatpush2.msra.mxu0 0.0
        %2189 = vmatprep.subr.mxu0 0.0
        %2190 = vmatpush2.msra.mxu0 0.0
        %2191 = vmatprep.subr.mxu0 0.0
        %2192 = vmatpush2.msra.mxu0 0.0
        %2193 = vmatprep.subr.mxu0 0.0
        %2194 = vmatpush2.msra.mxu0 0.0
        %2195 = vmatprep.subr.mxu0 0.0
        %2196 = vmatpush2.msra.mxu0 0.0
        %2197 = vmatprep.subr.mxu0 0.0
        %2198 = vmatpush2.msra.mxu0 0.0
        %2199 = vmatprep.subr.mxu0 0.0
        %2200 = vmatpush2.msra.mxu0 0.0
        %2201 = vmatprep.subr.mxu0 0.0
        %2202 = vmatpush2.msra.mxu0 0.0
        %2203 = vmatprep.subr.mxu0 0.0
        %2204 = vmatpush2.msra.mxu0 0.0
        %2205 = vmatprep.subr.mxu0 0.0
        %2206 = vmatpush2.msra.mxu0 0.0
        %2207 = vmatprep.subr.mxu0 0.0
        %2208 = vmatpush2.msra.mxu0 0.0
        %2209 = vmatprep.subr.mxu0 0.0
        %2210 = vmatpush2.msra.mxu0 0.0
        %2211 = vmatprep.subr.mxu0 0.0
        %2212 = vmatpush2.msra.mxu0 0.0
        %2213 = vmatprep.subr.mxu0 0.0
        %2214 = vmatpush2.msra.mxu0 0.0
        %2215 = vmatprep.subr.mxu0 0.0
        %2216 = vmatpush2.msra.mxu0 0.0
        %2217 = vmatprep.mubr.f32.mxu0 0.0
        %2218 = vmatmul.mubr.f32.gmra.mxu0 %v2151
        %v2219 = vpop.f32.mrf.mxu0
        %v2220 = vadd.f32 0.0, %v2219
        %v2221 = vpop.f32.mrf.mxu0
        %2222 = vdwg.mxu0
        %v2223 = vrot.slane %v648, 7
        %v2224 = vsel %vm636, %v2223, 0
        %2226 = vmatprep.subr.mxu0 0.0
        %2227 = vmatpush1.msra.mxu0 0.0
        %2228 = vmatprep.subr.mxu0 0.0
        %2229 = vmatpush1.msra.mxu0 0.0
        %2230 = vmatprep.subr.mxu0 0.0
        %2231 = vmatpush1.msra.mxu0 0.0
        %2232 = vmatprep.subr.mxu0 0.0
        %2233 = vmatpush1.msra.mxu0 0.0
        %2234 = vmatprep.subr.mxu0 0.0
        %2235 = vmatpush1.msra.mxu0 0.0
        %2236 = vmatprep.subr.mxu0 0.0
        %2237 = vmatpush1.msra.mxu0 0.0
        %2238 = vmatprep.subr.mxu0 0.0
        %2239 = vmatpush1.msra.mxu0 0.0
        %2240 = vmatprep.subr.mxu0 0.0
        %2241 = vmatpush1.msra.mxu0 0.0
        %2242 = vmatprep.subr.mxu0 0.0
        %2243 = vmatpush1.msra.mxu0 0.0
        %2244 = vmatprep.subr.mxu0 0.0
        %2245 = vmatpush1.msra.mxu0 0.0
        %2246 = vmatprep.subr.mxu0 0.0
        %2247 = vmatpush1.msra.mxu0 0.0
        %2248 = vmatprep.subr.mxu0 0.0
        %2249 = vmatpush1.msra.mxu0 0.0
        %2250 = vmatprep.subr.mxu0 0.0
        %2251 = vmatpush1.msra.mxu0 0.0
        %2252 = vmatprep.subr.mxu0 0.0
        %2253 = vmatpush1.msra.mxu0 0.0
        %2254 = vmatprep.subr.mxu0 0.0
        %2255 = vmatpush1.msra.mxu0 %v1711
        %2256 = vmatprep.subr.mxu0 0.0
        %2257 = vmatpush1.msra.mxu0 %v1710
        %2258 = vmatprep.subr.mxu0 0.0
        %2259 = vmatpush2.msra.mxu0 0.0
        %2260 = vmatprep.subr.mxu0 0.0
        %2261 = vmatpush2.msra.mxu0 0.0
        %2262 = vmatprep.subr.mxu0 0.0
        %2263 = vmatpush2.msra.mxu0 0.0
        %2264 = vmatprep.subr.mxu0 0.0
        %2265 = vmatpush2.msra.mxu0 0.0
        %2266 = vmatprep.subr.mxu0 0.0
        %2267 = vmatpush2.msra.mxu0 0.0
        %2268 = vmatprep.subr.mxu0 0.0
        %2269 = vmatpush2.msra.mxu0 0.0
        %2270 = vmatprep.subr.mxu0 0.0
        %2271 = vmatpush2.msra.mxu0 0.0
        %2272 = vmatprep.subr.mxu0 0.0
        %2273 = vmatpush2.msra.mxu0 0.0
        %2274 = vmatprep.subr.mxu0 0.0
        %2275 = vmatpush2.msra.mxu0 0.0
        %2276 = vmatprep.subr.mxu0 0.0
        %2277 = vmatpush2.msra.mxu0 0.0
        %2278 = vmatprep.subr.mxu0 0.0
        %2279 = vmatpush2.msra.mxu0 0.0
        %2280 = vmatprep.subr.mxu0 0.0
        %2281 = vmatpush2.msra.mxu0 0.0
        %2282 = vmatprep.subr.mxu0 0.0
        %2283 = vmatpush2.msra.mxu0 0.0
        %2284 = vmatprep.subr.mxu0 0.0
        %2285 = vmatpush2.msra.mxu0 0.0
        %2286 = vmatprep.subr.mxu0 0.0
        %2287 = vmatpush2.msra.mxu0 0.0
        %2288 = vmatprep.subr.mxu0 0.0
        %2289 = vmatpush2.msra.mxu0 0.0
        %2290 = vmatprep.mubr.f32.mxu0 0.0
        %2291 = vmatmul.mubr.f32.gmra.mxu0 %v2224
        %v2292 = vpop.f32.mrf.mxu0
        %v2293 = vadd.f32 0.0, %v2292
        %v2294 = vpop.f32.mrf.mxu0
        %2295 = vdwg.mxu0
        %v2297 = vrot.slane %v1855, 7
        %v2300 = vrot.slane %v1928, 6
        %v2303 = vrot.slane %v2001, 5
        %v2306 = vrot.slane %v2074, 4
        %v2309 = vrot.slane %v2147, 3
        %v2312 = vrot.slane %v2220, 2
        %v2315 = vrot.slane %v2293, 1
        %v2317 = vsel %vm578, %v1782, %v2297
        %vm2318 = vcmask 1041408
        %v2319 = vsel %vm2318, %v2317, %v2300
        %vm2320 = vcmask 1042432
        %v2321 = vsel %vm2320, %v2319, %v2303
        %vm2322 = vcmask 1043456
        %v2323 = vsel %vm2322, %v2321, %v2306
        %vm2324 = vcmask 1044480
        %v2325 = vsel %vm2324, %v2323, %v2309
        %vm2326 = vcmask 1045504
        %v2327 = vsel %vm2326, %v2325, %v2312
        %vm2328 = vcmask 1046528
        %v2329 = vsel %vm2328, %v2327, %v2315
        %2330 = vst.msk [vmem:[#allocation6] sm:$0xff] %vm521, %v2329
        %v2331 = vld [vmem:[#allocation6] sm:$0xff]
        %v2332 = vld [vmem:[%s8] sm:$0x1]
        %v2334 = vlaneseq
        %v2335 = vshrl.u32 %v2334, 7
        %v2336 = vsub.s32 0, %v2335
        %v2337 = vrot.slane %v2332, %v2336
        %v2339 = vmul.f32 %v487, %v2337
        %v2340 = vadd.f32 %v2331, %v2339
        %v2341 = vxor.u32 %v412, 2147483648
        %v2342 = vmul.f32 %v2341, 1.442695
        %v2343 = vpow.pop %v2342
        %v2344 = vadd.f32 %v2343, 1.0
        %v2345 = vrcp.pop %v2344
        %v2346 = vmul.f32 1.0, %v2345
        %v2347 = vmul.f32 %v412, %v2346
        %2349 = vrot.lane.b32.xlu0 %v2347, 64
        %v2350 = vpop.permute.xlu0 %2349
        %v2352 = vmul.f32 %v2340, %v2350
        %v2353 = vpack.c.bf16 %v2352, %v2352
        %v2354 = vld [vmem:[%s9] sm:$0xf]
        %v2355 = vld [vmem:[%s9 + $0x4] sm:$0xf]
        %v2356 = vld [vmem:[%s9 + $0x8] sm:$0xf]
        %v2357 = vld [vmem:[%s9 + $0xc] sm:$0xf]
        %v2358 = vld [vmem:[%s9 + $0x10] sm:$0xf]
        %v2359 = vld [vmem:[%s9 + $0x14] sm:$0xf]
        %v2360 = vld [vmem:[%s9 + $0x18] sm:$0xf]
        %v2361 = vld [vmem:[%s9 + $0x1c] sm:$0xf]
        %v2370 = vunpack.c.l.b16 %v2354
        %v2371 = vunpack.c.l.b16 %v2355
        %v2372 = vunpack.c.l.b16 %v2356
        %v2373 = vunpack.c.l.b16 %v2357
        %v2374 = vunpack.c.l.b16 %v2358
        %v2375 = vunpack.c.l.b16 %v2359
        %v2376 = vunpack.c.l.b16 %v2360
        %v2377 = vunpack.c.l.b16 %v2361
        %v2378 = vpack.c.b16 %v2371, %v2370
        %v2379 = vpack.c.b16 %v2373, %v2372
        %v2380 = vpack.c.b16 %v2375, %v2374
        %v2381 = vpack.c.b16 %v2377, %v2376
        %v2387 = vsel %vm521, %v2353, 0
        %2389 = vmatprep.subr.bf16.mxu0 0
        %2390 = vmatpush1.bf16.msra.mxu0 0
        %2391 = vmatprep.subr.bf16.mxu0 0
        %2392 = vmatpush1.bf16.msra.mxu0 0
        %2393 = vmatprep.subr.bf16.mxu0 0
        %2394 = vmatpush1.bf16.msra.mxu0 0
        %2395 = vmatprep.subr.bf16.mxu0 0
        %2396 = vmatpush1.bf16.msra.mxu0 0
        %2397 = vmatprep.subr.bf16.mxu0 0
        %2398 = vmatpush1.bf16.msra.mxu0 %v2381
        %2399 = vmatprep.subr.bf16.mxu0 0
        %2400 = vmatpush1.bf16.msra.mxu0 %v2380
        %2401 = vmatprep.subr.bf16.mxu0 0
        %2402 = vmatpush1.bf16.msra.mxu0 %v2379
        %2403 = vmatprep.subr.bf16.mxu0 0
        %2404 = vmatpush1.bf16.msra.mxu0 %v2378
        %2405 = vmatprep.subr.bf16.mxu0 0
        %2406 = vmatpush2.bf16.msra.mxu0 0
        %2407 = vmatprep.subr.bf16.mxu0 0
        %2408 = vmatpush2.bf16.msra.mxu0 0
        %2409 = vmatprep.subr.bf16.mxu0 0
        %2410 = vmatpush2.bf16.msra.mxu0 0
        %2411 = vmatprep.subr.bf16.mxu0 0
        %2412 = vmatpush2.bf16.msra.mxu0 0
        %2413 = vmatprep.subr.bf16.mxu0 0
        %2414 = vmatpush2.bf16.msra.mxu0 0
        %2415 = vmatprep.subr.bf16.mxu0 0
        %2416 = vmatpush2.bf16.msra.mxu0 0
        %2417 = vmatprep.subr.bf16.mxu0 0
        %2418 = vmatpush2.bf16.msra.mxu0 0
        %2419 = vmatprep.subr.bf16.mxu0 0
        %2420 = vmatpush2.bf16.msra.mxu0 0
        %2421 = vmatprep.mubr.bf16.mxu0 0
        %2422 = vmatmul.mubr.bf16.gmra.mxu0 %v2387
        %v2423 = vpop.f32.mrf.mxu0
        %v2424 = vadd.f32 0.0, %v2423
        %v2425 = vpop.f32.mrf.mxu0
        %v2426 = vpop.f32.mrf.mxu0
        %v2427 = vpop.f32.mrf.mxu0
        %2428 = vdwg.mxu0
        %2429 = vst.msk [vmem:[%s350] sm:$0xff] %vm373, %v2424
        %s2430 = sand.u32 %s247, 1
        %s2431 = scalar_lea.sflag [#allocation8], %s2430
        %s2432 = sand.u32 %s247, 1
        %s2433 = smul.addr %s2432, 8
        %s2434 = scalar_lea.vmem [#allocation7], %s2433
        // Predicated region
        $region61: #{mamba_block_pallas.1} parent=59 // pred_check
          %p2435 = pneg %p257
        $region62: #{mamba_block_pallas.1} parent=59 // pred_check_branch
          %2437 = sbr.rel (%p2435) target = $region64
        $region63: #{mamba_block_pallas.1} parent=59 // pred_region
          %s2439 = ssub.s32 128, 128
          %2440 = vsyncadd %s2431, %s2439
          %s2441 = smul.addr %s24, 128
          %s2442 = scalar_lea.hbm %s10, %s2441
          %s2444 = sshll.u32 %s2434, 4
          %s2445 = int_to_ptr.vmem [resolvable:$true] %s2444
          %2447 = dma.vmem_to_hbm [thread:$0]  %s2445, 128, %s2442, %s2431
        $region64: #{mamba_block_pallas.1} parent=59 // pred_fallthru
          _
      $region60: #{mamba_block_pallas.1} parent=5 // pred_fallthru
        _
      %p2448 = scmp.le.s32.totalorder 2, %s19
      // Predicated region
      $region65: #{mamba_block_pallas.1} parent=5 // pred_check
        %p2449 = pneg %p2448
      $region66: #{mamba_block_pallas.1} parent=5 // pred_check_branch
        %2451 = sbr.rel (%p2449) target = $region68
      $region67: #{mamba_block_pallas.1} parent=5 // pred_region
        %s2452 = ssub.s32 %s19, 2
        // Predicated region
        $region69: #{mamba_block_pallas.1} parent=67 // pred_check
          %p2453 = pneg %p263
        $region70: #{mamba_block_pallas.1} parent=67 // pred_check_branch
          %2455 = sbr.rel (%p2453) target = $region72
        $region71: #{mamba_block_pallas.1} parent=67 // pred_region
          %s2456 = sand.u32 %s248, 1
          %s2457 = scalar_lea.sflag [#allocation8], %s2456
          %s2458 = sand.u32 %s248, 1
          %s2459 = smul.addr %s2458, 8
          %s2460 = scalar_lea.vmem [#allocation7], %s2459
          %2461 = dma.done %s2457, 128
        $region72: #{mamba_block_pallas.1} parent=67 // pred_fallthru
          _
      $region68: #{mamba_block_pallas.1} parent=5 // pred_fallthru
        _
    $region6: #{mamba_block_pallas.1} parent=1 // loop_footer
      %s23 = sadd.s32 1, %s19
    $region7: #{mamba_block_pallas.1} parent=1 // loop_footer_branch
      %18 = sbr.rel target = $region3
    $region8: #{mamba_block_pallas.1} parent=1 // loop_exit
      _
    %2462 = vsyncpa [#allocation8], 1
    %s2463 = scalar_lea.sflag [#allocation8], 1
    %2464 = vsyncpa %s2463, 1

</llo_original>
